<compile_context>
chip_gen: v7x
topology: tpu7x:2x2x1
jax: 0.10.0
libtpu: 0.0.40
codegen_flags: <defaults>
</compile_context>

<pallas_src>
import math

import jax
import jax.numpy as jnp
import numpy as np
from jax.experimental import pallas as pl
from jax.experimental.pallas import tpu as pltpu


def _round_up(x, m):
    return ((x + m - 1) // m) * m


# -----------------------------------------------------------------------------
# Pallas kernel: one NGCF propagation layer over a flat nonzero-block schedule
# -----------------------------------------------------------------------------
def _ngcf_layer_kernel(rowid_ref, colblk_ref, adjidx_ref, first_ref, last_ref,
                       valid_ref,                                  # scalar prefetch
                       adj_ref, ego_col_ref, ego_row_ref, row_scale_ref,
                       gc_w_ref, gc_b_ref, bi_w_ref, bi_b_ref,
                       ego_out_ref, norm_out_ref,
                       acc_ref):
    del rowid_ref, colblk_ref, adjidx_ref      # only used by the index_maps
    s = pl.program_id(0)

    # New output row tile -> reset the f32 accumulator.
    @pl.when(first_ref[s] == 1)
    def _():
        acc_ref[...] = jnp.zeros_like(acc_ref)

    # side_embeddings accumulation over NONZERO adjacency blocks only.
    # valid == 0 marks dummy steps emitted for row tiles that have no nonzero
    # blocks (they still need the bias-only epilogue + output writeback).
    @pl.when(valid_ref[s] == 1)
    def _():
        acc_ref[...] += jnp.dot(adj_ref[...].astype(jnp.bfloat16),   # int8 -> bf16
                                ego_col_ref[...],
                                preferred_element_type=jnp.float32)

    # Last step of this row tile -> dequant, two MXU matmuls, leaky_relu,
    # L2 normalize, store both outputs (bf16 ego for the next layer, f32 norm).
    @pl.when(last_ref[s] == 1)
    def _():
        side = acc_ref[...] * row_scale_ref[...]          # (tm, dp_in) f32
        ego = ego_row_ref[...].astype(jnp.float32)        # (tm, dp_in) f32

        # sum_embeddings = leaky_relu(GC_W(side))
        sum_emb = jnp.dot(side.astype(jnp.bfloat16), gc_w_ref[...],
                          preferred_element_type=jnp.float32) + gc_b_ref[...]
        sum_emb = jnp.where(sum_emb >= 0.0, sum_emb, 0.01 * sum_emb)

        # bi_embeddings = leaky_relu(Bi_W(ego * side))
        bi_in = (ego * side).astype(jnp.bfloat16)
        bi_emb = jnp.dot(bi_in, bi_w_ref[...],
                         preferred_element_type=jnp.float32) + bi_b_ref[...]
        bi_emb = jnp.where(bi_emb >= 0.0, bi_emb, 0.01 * bi_emb)

        ego_new = sum_emb + bi_emb
        # TODO(synk): nn.Dropout (mess_dropout) is eval-mode identity here;
        # training-mode Bernoulli masking (pltpu.prng_random_bits) not done.

        # F.normalize(p=2, dim=1): x / max(||x||, 1e-12)
        #                        = x * rsqrt(max(sum(x^2), 1e-24))   (EUP slot)
        inv_norm = jax.lax.rsqrt(jnp.maximum(
            jnp.sum(ego_new * ego_new, axis=1, keepdims=True), 1e-24))

        ego_out_ref[...] = ego_new.astype(ego_out_ref.dtype)
        norm_out_ref[...] = (ego_new * inv_norm).astype(norm_out_ref.dtype)


def ngcf_layer(adj_blocks, rowid, colblk, adjidx, first, last, valid,
               row_scale, ego_bf16, gc_w, gc_b, bi_w, bi_b, *, tm, tk):
    """One NGCF layer as a single pallas_call over a flat nonzero-block grid.

    adj_blocks : (nnz_blocks*tm, tk) int8   compacted quantized adjacency blocks
    rowid/colblk/adjidx/first/last/valid : (n_steps,) int32 schedule (SMEM)
    row_scale  : (Npad, 1) f32              per-row int8 dequant scale
    ego_bf16   : (Npad, dp_in) bf16         ego embeddings (read twice)
    gc_w/bi_w  : (dp_in, dp_out) bf16       zero-padded, lane-dense weights
    gc_b/bi_b  : (1, dp_out) f32
    """
    n_pad, dp_in = ego_bf16.shape
    dp_out = gc_w.shape[1]
    n_steps = rowid.shape[0]
    assert n_pad % tm == 0 and n_pad % tk == 0

    out_shape = (jax.ShapeDtypeStruct((n_pad, dp_out), jnp.bfloat16),   # ego
                 jax.ShapeDtypeStruct((n_pad, dp_out), jnp.float32))    # normed

    return pl.pallas_call(
        _ngcf_layer_kernel,
        out_shape=out_shape,
        grid_spec=pltpu.PrefetchScalarGridSpec(
            num_scalar_prefetch=6,
            grid=(n_steps,),
            in_specs=[
                # compacted adjacency: block j occupies rows [j*tm, (j+1)*tm)
                pl.BlockSpec((tm, tk),
                             lambda s, rid, cb, ai, fi, la, va: (ai[s], 0)),
                # ego rows feeding A @ ego for this column block (bf16 stream)
                pl.BlockSpec((tk, dp_in),
                             lambda s, rid, cb, ai, fi, la, va: (cb[s], 0)),
                # ego rows of the current output row tile (for ego * side)
                pl.BlockSpec((tm, dp_in),
                             lambda s, rid, cb, ai, fi, la, va: (rid[s], 0)),
                # per-row dequant scale
                pl.BlockSpec((tm, 1),
                             lambda s, rid, cb, ai, fi, la, va: (rid[s], 0)),
                # weights / biases: constant block index (single-buffer-worthy)
                pl.BlockSpec((dp_in, dp_out), lambda *_: (0, 0)),   # GC W
                pl.BlockSpec((1, dp_out), lambda *_: (0, 0)),       # GC b
                pl.BlockSpec((dp_in, dp_out), lambda *_: (0, 0)),   # Bi W
                pl.BlockSpec((1, dp_out), lambda *_: (0, 0)),       # Bi b
            ],
            out_specs=[
                pl.BlockSpec((tm, dp_out),
                             lambda s, rid, cb, ai, fi, la, va: (rid[s], 0)),
                pl.BlockSpec((tm, dp_out),
                             lambda s, rid, cb, ai, fi, la, va: (rid[s], 0)),
            ],
            scratch_shapes=[pltpu.VMEM((tm, dp_in), jnp.float32)],
        ),
        compiler_params=pltpu.CompilerParams(
            dimension_semantics=("arbitrary",)),
    )(rowid, colblk, adjidx, first, last, valid,
      adj_blocks, ego_bf16, ego_bf16, row_scale,
      gc_w, gc_b, bi_w, bi_b)


# -----------------------------------------------------------------------------
# Host-side, once-per-graph preprocessing (adjacency is static).
# Pure numpy: no traced arrays, no per-forward device->host transfers.
# At real scale build the blocks directly from the sparse COO interaction list
# (never form the dense matrix) and use tm=512, tk=1024+ to amortize the
# ~0.35 us per-grid-step overhead.
# -----------------------------------------------------------------------------
def prepare_adjacency(norm_adj, *, tm=128, tk=128):
    a = np.asarray(norm_adj, dtype=np.float32)
    n = a.shape[0]
    n_pad = _round_up(n, math.lcm(tm, tk))
    a_pad = np.zeros((n_pad, n_pad), np.float32)
    a_pad[:n, :n] = a

    # Per-row int8 quantization (values are 1/sqrt(d_i d_j) in [0, 1]).
    # On v7x use float8_e4m3fn instead (v7x MXU has fp8 but no int path).
    row_max = np.abs(a_pad).max(axis=1)
    row_scale = np.where(row_max > 0.0, row_max / 127.0, 1.0).astype(np.float32)
    a_q = np.clip(np.rint(a_pad / row_scale[:, None]), -127, 127).astype(np.int8)

    n_i, n_k = n_pad // tm, n_pad // tk
    blocks, rowid, colblk, adjidx, valid = [], [], [], [], []
    for i in range(n_i):
        rows = a_q[i * tm:(i + 1) * tm]
        found = False
        for k in range(n_k):
            blk = rows[:, k * tk:(k + 1) * tk]
            if np.any(blk != 0):
                adjidx.append(len(blocks))
                blocks.append(blk)
                rowid.append(i)
                colblk.append(k)
                valid.append(1)
                found = True
        if not found:
            # Row tile with no nonzero blocks (isolated/padded nodes): emit one
            # dummy step so its output tile is still written (bias-only rows,
            # keeps the next layer's ego stream finite).
            adjidx.append(0)
            rowid.append(i)
            colblk.append(0)
            valid.append(0)
    if not blocks:
        blocks.append(np.zeros((tm, tk), np.int8))

    rowid = np.asarray(rowid, np.int32)
    n_steps = int(rowid.shape[0])
    changed = (rowid[1:] != rowid[:-1]).astype(np.int32)
    first = np.ones(n_steps, np.int32)
    last = np.ones(n_steps, np.int32)
    first[1:] = changed
    last[:-1] = changed

    # Compacted nonzero blocks stacked along rows -> HBM holds nnz_blocks*tm*tk
    # int8 bytes, never the dense N^2 matrix.
    adj_blocks = np.concatenate(blocks, axis=0)

    return dict(
        tm=tm, tk=tk, n_pad=n_pad, n_steps=n_steps,
        adj_blocks=jnp.asarray(adj_blocks),
        row_scale=jnp.asarray(row_scale.reshape(n_pad, 1)),
        rowid=jnp.asarray(rowid),
        colblk=jnp.asarray(np.asarray(colblk, np.int32)),
        adjidx=jnp.asarray(np.asarray(adjidx, np.int32)),
        first=jnp.asarray(first),
        last=jnp.asarray(last),
        valid=jnp.asarray(np.asarray(valid, np.int32)),
        # Dequantized dense adjacency, for the (small) demo reference only.
        adj_deq=(a_q.astype(np.float32) * row_scale[:, None])[:n, :n],
    )


def _pad_linear(w, b, dp_in, dp_out):
    din, dout = w.shape
    w_p = jnp.zeros((dp_in, dp_out), jnp.float32).at[:din, :dout].set(w)
    b_p = jnp.zeros((1, dp_out), jnp.float32).at[:, :dout].set(b)
    return w_p.astype(jnp.bfloat16), b_p


# -----------------------------------------------------------------------------
# NGCF forward (glue in plain JAX; hot path inside the Pallas kernel)
# -----------------------------------------------------------------------------
def ngcf_forward(sched, user_emb, item_emb, gc_ws, gc_bs, bi_ws, bi_bs,
                 n_users):
    tm, tk = sched["tm"], sched["tk"]
    n_pad = sched["n_pad"]
    n_u, emb_dim = user_emb.shape
    n_nodes = n_u + item_emb.shape[0]

    dp_in = _round_up(emb_dim, 128)
    ego0 = jnp.zeros((n_pad, dp_in), jnp.float32)
    ego0 = ego0.at[:n_u, :emb_dim].set(user_emb)
    ego0 = ego0.at[n_u:n_nodes, :emb_dim].set(item_emb)
    ego = ego0.astype(jnp.bfloat16)          # lane-padded bf16 ego stream

    all_embeddings = [ego0[:n_nodes, :emb_dim]]
    for gw, gb, bw, bb in zip(gc_ws, gc_bs, bi_ws, bi_bs):
        d_out = gw.shape[1]
        dp_out = _round_up(d_out, 128)
        gw_p, gb_p = _pad_linear(gw, gb, dp_in, dp_out)
        bw_p, bb_p = _pad_linear(bw, bb, dp_in, dp_out)

        ego, normed = ngcf_layer(
            sched["adj_blocks"], sched["rowid"], sched["colblk"],
            sched["adjidx"], sched["first"], sched["last"], sched["valid"],
            sched["row_scale"], ego, gw_p, gb_p, bw_p, bb_p, tm=tm, tk=tk)

        all_embeddings.append(normed[:n_nodes, :d_out])
        dp_in = dp_out                       # next layer consumes padded bf16 ego

    all_embeddings = jnp.concatenate(all_embeddings, axis=1)
    return all_embeddings[:n_users], all_embeddings[n_users:]


# -----------------------------------------------------------------------------
# Pure-JAX reference mirroring the kernel's numerics (int8-dequantized
# adjacency, bf16 MXU operands) so the sanity check is like-for-like.
# -----------------------------------------------------------------------------
def ngcf_forward_ref(adj_deq, user_emb, item_emb, gc_ws, gc_bs, bi_ws, bi_bs,
                     n_users):
    def lrelu(x):
        return jnp.where(x >= 0.0, x, 0.01 * x)

    def b16(x):
        return x.astype(jnp.bfloat16)

    adj = jnp.asarray(adj_deq, jnp.float32)
    ego = jnp.concatenate([user_emb, item_emb], axis=0)
    all_embeddings = [ego]
    for gw, gb, bw, bb in zip(gc_ws, gc_bs, bi_ws, bi_bs):
        ego_b = b16(ego).astype(jnp.float32)
        side = jnp.dot(adj, ego_b, precision=jax.lax.Precision.HIGHEST)
        sum_emb = lrelu(jnp.dot(b16(side), b16(gw),
                                preferred_element_type=jnp.float32) + gb)
        bi_emb = lrelu(jnp.dot(b16(ego_b * side), b16(bw),
                               preferred_element_type=jnp.float32) + bb)
        ego = sum_emb + bi_emb
        inv = jax.lax.rsqrt(jnp.maximum(
            jnp.sum(ego * ego, axis=1, keepdims=True), 1e-24))
        all_embeddings.append(ego * inv)
    all_embeddings = jnp.concatenate(all_embeddings, axis=1)
    return all_embeddings[:n_users], all_embeddings[n_users:]


# -----------------------------------------------------------------------------
# Main
# -----------------------------------------------------------------------------
if __name__ == "__main__":
    key = jax.random.PRNGKey(0)

    # Small, deliberately non-tile-aligned node counts (padded internally).
    n_users, n_items = 110, 130
    N = n_users + n_items                    # 240 -> padded to 256
    emb_dim = 32
    layer_size = [32, 32]                    # config['layer_size']
    n_layers = len(layer_size)
    dims = [emb_dim] + layer_size

    keys = jax.random.split(key, 4 + 4 * n_layers)

    # Deterministic xavier-uniform-style embedding init.
    bound = (6.0 / (n_users + emb_dim)) ** 0.5
    user_emb = jax.random.uniform(keys[0], (n_users, emb_dim), jnp.float32,
                                  -bound, bound)
    bound = (6.0 / (n_items + emb_dim)) ** 0.5
    item_emb = jax.random.uniform(keys[1], (n_items, emb_dim), jnp.float32,
                                  -bound, bound)

    # Linear layers stored as (Din, Dout) so kernel does x @ W + b
    # (equivalent to PyTorch Linear's x @ W.T + b).
    gc_ws, gc_bs, bi_ws, bi_bs = [], [], [], []
    for i in range(n_layers):
        kgw, kgb, kbw, kbb = keys[4 + 4 * i: 8 + 4 * i]
        gc_ws.append(0.1 * jax.random.normal(kgw, (dims[i], dims[i + 1]),
                                             jnp.float32))
        gc_bs.append(0.1 * jax.random.normal(kgb, (1, dims[i + 1]),
                                             jnp.float32))
        bi_ws.append(0.1 * jax.random.normal(kbw, (dims[i], dims[i + 1]),
                                             jnp.float32))
        bi_bs.append(0.1 * jax.random.normal(kbb, (1, dims[i + 1]),
                                             jnp.float32))

    # Symmetric-normalised bipartite adjacency built on the HOST (stand-in for
    # the torch sparse norm_adj).  User-user / item-item quadrants are zero,
    # which the block-sparse schedule exploits.
    r = np.asarray(jax.random.uniform(keys[2], (n_users, n_items)) < 0.05,
                   np.float32)
    adj = np.zeros((N, N), np.float32)
    adj[:n_users, n_users:] = r
    adj[n_users:, :n_users] = r.T
    deg = adj.sum(axis=1)
    d_inv_sqrt = np.where(deg > 0, 1.0 / np.sqrt(np.maximum(deg, 1e-12)), 0.0)
    norm_adj = adj * d_inv_sqrt[:, None] * d_inv_sqrt[None, :]

    # Once-per-graph host preprocessing.  Small tiles for the tiny demo; at
    # real scale use tm=512, tk=1024+ (per-step overhead amortization) and
    # check double-buffered VMEM stays well under the 32 MiB scoped default.
    sched = prepare_adjacency(norm_adj, tm=128, tk=128)

    u_g, i_g = ngcf_forward(sched, user_emb, item_emb,
                            gc_ws, gc_bs, bi_ws, bi_bs, n_users)
    u_g = jax.block_until_ready(u_g)
    i_g = jax.block_until_ready(i_g)

    # Sanity check against the like-for-like JAX reference.
    u_ref, i_ref = ngcf_forward_ref(sched["adj_deq"], user_emb, item_emb,
                                    gc_ws, gc_bs, bi_ws, bi_bs, n_users)
    assert u_g.shape == (n_users, emb_dim * (n_layers + 1))
    assert i_g.shape == (n_items, emb_dim * (n_layers + 1))
    err_u = float(jnp.max(jnp.abs(u_g - u_ref)))
    err_i = float(jnp.max(jnp.abs(i_g - i_ref)))
    assert err_u < 2e-3 and err_i < 2e-3, (err_u, err_i)

    print("KERNEL_OK")
</pallas_src>

<mosaic_0001>
module attributes {stable_mosaic.version = 11 : i64} {
  func.func @_ngcf_layer_kernel(%arg0: i32, %arg1: memref<3xi32, #tpu.memory_space<smem>>, %arg2: memref<3xi32, #tpu.memory_space<smem>>, %arg3: memref<3xi32, #tpu.memory_space<smem>>, %arg4: memref<3xi32, #tpu.memory_space<smem>>, %arg5: memref<3xi32, #tpu.memory_space<smem>>, %arg6: memref<3xi32, #tpu.memory_space<smem>>, %arg7: memref<128x128xi8, #tpu.memory_space<vmem>>, %arg8: memref<128x128xbf16, #tpu.memory_space<vmem>>, %arg9: memref<128x128xbf16, #tpu.memory_space<vmem>>, %arg10: memref<128x1xf32, #tpu.memory_space<vmem>>, %arg11: memref<128x128xbf16, #tpu.memory_space<vmem>>, %arg12: memref<1x128xf32, #tpu.memory_space<vmem>>, %arg13: memref<128x128xbf16, #tpu.memory_space<vmem>>, %arg14: memref<1x128xf32, #tpu.memory_space<vmem>>, %arg15: memref<128x128xbf16, #tpu.memory_space<vmem>>, %arg16: memref<128x128xf32, #tpu.memory_space<vmem>>, %arg17: memref<128x128xf32, #tpu.memory_space<vmem>>) attributes {dimension_semantics = [#tpu.dimension_semantics<arbitrary>], iteration_bounds = array<i64: 3>, scalar_prefetch = 6 : i64, scratch_operands = 1 : i64, tpu.core_type = #tpu.core_type<tc>, window_params = [{transform_indices = @transform_0, window_bounds = array<i64: 128, 128>}, {transform_indices = @transform_1, window_bounds = array<i64: 128, 128>}, {transform_indices = @transform_2, window_bounds = array<i64: 128, 128>}, {transform_indices = @transform_3, window_bounds = array<i64: 128, 1>}, {pipeline_mode = #tpu.pipeline_mode<synchronous>, transform_indices = @transform_4, window_bounds = array<i64: 128, 128>}, {pipeline_mode = #tpu.pipeline_mode<synchronous>, transform_indices = @transform_5, window_bounds = array<i64: 1, 128>}, {pipeline_mode = #tpu.pipeline_mode<synchronous>, transform_indices = @transform_6, window_bounds = array<i64: 128, 128>}, {pipeline_mode = #tpu.pipeline_mode<synchronous>, transform_indices = @transform_7, window_bounds = array<i64: 1, 128>}, {transform_indices = @transform_8, window_bounds = array<i64: 128, 128>}, {transform_indices = @transform_9, window_bounds = array<i64: 128, 128>}]} {
    %0 = arith.index_cast %arg0 : i32 to index
    %1 = memref.load %arg4[%0] : memref<3xi32, #tpu.memory_space<smem>>
    %c1_i32 = arith.constant 1 : i32
    %2 = arith.cmpi eq, %1, %c1_i32 : i32
    %3 = arith.extui %2 : i1 to i32
    %c0_i32 = arith.constant 0 : i32
    %4 = arith.cmpi ne, %3, %c0_i32 : i32
    scf.if %4 {
      %cst = arith.constant 0.000000e+00 : f32
      %15 = vector.broadcast %cst : f32 to vector<128x128xf32>
      %c0 = arith.constant 0 : index
      %c0_4 = arith.constant 0 : index
      %16 = vector.load %arg17[%c0, %c0_4] : memref<128x128xf32, #tpu.memory_space<vmem>>, vector<128x128xf32>
      tpu.vector_store %arg17[%c0, %c0_4], %15 {strides = array<i32>} : memref<128x128xf32, #tpu.memory_space<vmem>>, vector<128x128xf32>,
    } else {
    }
    %5 = arith.index_cast %arg0 : i32 to index
    %6 = memref.load %arg6[%5] : memref<3xi32, #tpu.memory_space<smem>>
    %c1_i32_0 = arith.constant 1 : i32
    %7 = arith.cmpi eq, %6, %c1_i32_0 : i32
    %8 = arith.extui %7 : i1 to i32
    %c0_i32_1 = arith.constant 0 : i32
    %9 = arith.cmpi ne, %8, %c0_i32_1 : i32
    scf.if %9 {
      %c0 = arith.constant 0 : index
      %c0_4 = arith.constant 0 : index
      %15 = vector.load %arg17[%c0, %c0_4] : memref<128x128xf32, #tpu.memory_space<vmem>>, vector<128x128xf32>
      %c0_5 = arith.constant 0 : index
      %c0_6 = arith.constant 0 : index
      %16 = vector.load %arg7[%c0_5, %c0_6] : memref<128x128xi8, #tpu.memory_space<vmem>>, vector<128x128xi8>
      %17 = arith.sitofp %16 : vector<128x128xi8> to vector<128x128xbf16>
      %c0_7 = arith.constant 0 : index
      %c0_8 = arith.constant 0 : index
      %18 = vector.load %arg8[%c0_7, %c0_8] : memref<128x128xbf16, #tpu.memory_space<vmem>>, vector<128x128xbf16>
      %cst = arith.constant dense<0.000000e+00> : vector<128x128xf32>
      %19 = tpu.matmul %17, %18, %cst {dimension_numbers = #tpu.dot_dimension_numbers<[1], [0], [0], [1], [0, 0, 1, 1], [], []>} : vector<128x128xbf16>, vector<128x128xbf16>, vector<128x128xf32> -> vector<128x128xf32>
      %20 = arith.addf %15, %19 : vector<128x128xf32>
      %c0_9 = arith.constant 0 : index
      %c0_10 = arith.constant 0 : index
      %21 = vector.load %arg17[%c0_9, %c0_10] : memref<128x128xf32, #tpu.memory_space<vmem>>, vector<128x128xf32>
      tpu.vector_store %arg17[%c0_9, %c0_10], %20 {strides = array<i32>} : memref<128x128xf32, #tpu.memory_space<vmem>>, vector<128x128xf32>,
    } else {
    }
    %10 = arith.index_cast %arg0 : i32 to index
    %11 = memref.load %arg5[%10] : memref<3xi32, #tpu.memory_space<smem>>
    %c1_i32_2 = arith.constant 1 : i32
    %12 = arith.cmpi eq, %11, %c1_i32_2 : i32
    %13 = arith.extui %12 : i1 to i32
    %c0_i32_3 = arith.constant 0 : i32
    %14 = arith.cmpi ne, %13, %c0_i32_3 : i32
    scf.if %14 {
      %c0 = arith.constant 0 : index
      %c0_4 = arith.constant 0 : index
      %15 = vector.load %arg17[%c0, %c0_4] : memref<128x128xf32, #tpu.memory_space<vmem>>, vector<128x128xf32>
      %c0_5 = arith.constant 0 : index
      %c0_6 = arith.constant 0 : index
      %16 = vector.load %arg10[%c0_5, %c0_6] : memref<128x1xf32, #tpu.memory_space<vmem>>, vector<128x1xf32>
      %17 = vector.broadcast %16 : vector<128x1xf32> to vector<128x128xf32>
      %18 = arith.mulf %15, %17 : vector<128x128xf32>
      %c0_7 = arith.constant 0 : index
      %c0_8 = arith.constant 0 : index
      %19 = vector.load %arg9[%c0_7, %c0_8] : memref<128x128xbf16, #tpu.memory_space<vmem>>, vector<128x128xbf16>
      %20 = arith.extf %19 : vector<128x128xbf16> to vector<128x128xf32>
      %21 = arith.truncf %18 : vector<128x128xf32> to vector<128x128xbf16>
      %c0_9 = arith.constant 0 : index
      %c0_10 = arith.constant 0 : index
      %22 = vector.load %arg11[%c0_9, %c0_10] : memref<128x128xbf16, #tpu.memory_space<vmem>>, vector<128x128xbf16>
      %cst = arith.constant dense<0.000000e+00> : vector<128x128xf32>
      %23 = tpu.matmul %21, %22, %cst {dimension_numbers = #tpu.dot_dimension_numbers<[1], [0], [0], [1], [0, 0, 1, 1], [], []>} : vector<128x128xbf16>, vector<128x128xbf16>, vector<128x128xf32> -> vector<128x128xf32>
      %c0_11 = arith.constant 0 : index
      %c0_12 = arith.constant 0 : index
      %24 = vector.load %arg12[%c0_11, %c0_12] : memref<1x128xf32, #tpu.memory_space<vmem>>, vector<1x128xf32>
      %25 = vector.broadcast %24 : vector<1x128xf32> to vector<128x128xf32>
      %26 = arith.addf %23, %25 : vector<128x128xf32>
      %cst_13 = arith.constant 0.000000e+00 : f32
      %27 = vector.broadcast %cst_13 : f32 to vector<128x128xf32>
      %28 = arith.cmpf oge, %26, %27 : vector<128x128xf32>
      %cst_14 = arith.constant 0.00999999977 : f32
      %29 = vector.broadcast %cst_14 : f32 to vector<128x128xf32>
      %30 = arith.mulf %29, %26 : vector<128x128xf32>
      %31 = arith.select %28, %26, %30 : vector<128x128xi1>, vector<128x128xf32>
      %32 = arith.mulf %20, %18 : vector<128x128xf32>
      %33 = arith.truncf %32 : vector<128x128xf32> to vector<128x128xbf16>
      %c0_15 = arith.constant 0 : index
      %c0_16 = arith.constant 0 : index
      %34 = vector.load %arg13[%c0_15, %c0_16] : memref<128x128xbf16, #tpu.memory_space<vmem>>, vector<128x128xbf16>
      %cst_17 = arith.constant dense<0.000000e+00> : vector<128x128xf32>
      %35 = tpu.matmul %33, %34, %cst_17 {dimension_numbers = #tpu.dot_dimension_numbers<[1], [0], [0], [1], [0, 0, 1, 1], [], []>} : vector<128x128xbf16>, vector<128x128xbf16>, vector<128x128xf32> -> vector<128x128xf32>
      %c0_18 = arith.constant 0 : index
      %c0_19 = arith.constant 0 : index
      %36 = vector.load %arg14[%c0_18, %c0_19] : memref<1x128xf32, #tpu.memory_space<vmem>>, vector<1x128xf32>
      %37 = vector.broadcast %36 : vector<1x128xf32> to vector<128x128xf32>
      %38 = arith.addf %35, %37 : vector<128x128xf32>
      %cst_20 = arith.constant 0.000000e+00 : f32
      %39 = vector.broadcast %cst_20 : f32 to vector<128x128xf32>
      %40 = arith.cmpf oge, %38, %39 : vector<128x128xf32>
      %cst_21 = arith.constant 0.00999999977 : f32
      %41 = vector.broadcast %cst_21 : f32 to vector<128x128xf32>
      %42 = arith.mulf %41, %38 : vector<128x128xf32>
      %43 = arith.select %40, %38, %42 : vector<128x128xi1>, vector<128x128xf32>
      %44 = arith.addf %31, %43 : vector<128x128xf32>
      %45 = arith.mulf %44, %44 : vector<128x128xf32>
      %cst_22 = arith.constant dense<0.000000e+00> : vector<128xf32>
      %46 = vector.multi_reduction <add>, %45, %cst_22 [1] : vector<128x128xf32> to vector<128xf32>
      %47 = vector.shape_cast %46 : vector<128xf32> to vector<128x1xf32>
      %cst_23 = arith.constant 1.000000e-24 : f32
      %48 = vector.broadcast %cst_23 : f32 to vector<128x1xf32>
      %49 = arith.maximumf %47, %48 : vector<128x1xf32>
      %50 = math.rsqrt %49 : vector<128x1xf32>
      %51 = arith.truncf %44 : vector<128x128xf32> to vector<128x128xbf16>
      %c0_24 = arith.constant 0 : index
      %c0_25 = arith.constant 0 : index
      %52 = vector.load %arg15[%c0_24, %c0_25] : memref<128x128xbf16, #tpu.memory_space<vmem>>, vector<128x128xbf16>
      tpu.vector_store %arg15[%c0_24, %c0_25], %51 {strides = array<i32>} : memref<128x128xbf16, #tpu.memory_space<vmem>>, vector<128x128xbf16>,
      %53 = vector.broadcast %50 : vector<128x1xf32> to vector<128x128xf32>
      %54 = arith.mulf %44, %53 : vector<128x128xf32>
      %c0_26 = arith.constant 0 : index
      %c0_27 = arith.constant 0 : index
      %55 = vector.load %arg16[%c0_26, %c0_27] : memref<128x128xf32, #tpu.memory_space<vmem>>, vector<128x128xf32>
      tpu.vector_store %arg16[%c0_26, %c0_27], %54 {strides = array<i32>} : memref<128x128xf32, #tpu.memory_space<vmem>>, vector<128x128xf32>,
    } else {
    }
    return
  }
  func.func @transform_0(%arg0: i32, %arg1: memref<3xi32, #tpu.memory_space<smem>>, %arg2: memref<3xi32, #tpu.memory_space<smem>>, %arg3: memref<3xi32, #tpu.memory_space<smem>>, %arg4: memref<3xi32, #tpu.memory_space<smem>>, %arg5: memref<3xi32, #tpu.memory_space<smem>>, %arg6: memref<3xi32, #tpu.memory_space<smem>>) -> (i32, i32) {
    %0 = arith.index_cast %arg0 : i32 to index
    %1 = memref.load %arg3[%0] : memref<3xi32, #tpu.memory_space<smem>>
    %c0_i32 = arith.constant 0 : i32
    %c0_i32_0 = arith.constant 0 : i32
    return %1, %c0_i32 : i32, i32
  }
  func.func @transform_1(%arg0: i32, %arg1: memref<3xi32, #tpu.memory_space<smem>>, %arg2: memref<3xi32, #tpu.memory_space<smem>>, %arg3: memref<3xi32, #tpu.memory_space<smem>>, %arg4: memref<3xi32, #tpu.memory_space<smem>>, %arg5: memref<3xi32, #tpu.memory_space<smem>>, %arg6: memref<3xi32, #tpu.memory_space<smem>>) -> (i32, i32) {
    %0 = arith.index_cast %arg0 : i32 to index
    %1 = memref.load %arg2[%0] : memref<3xi32, #tpu.memory_space<smem>>
    %c0_i32 = arith.constant 0 : i32
    %c0_i32_0 = arith.constant 0 : i32
    return %1, %c0_i32 : i32, i32
  }
  func.func @transform_2(%arg0: i32, %arg1: memref<3xi32, #tpu.memory_space<smem>>, %arg2: memref<3xi32, #tpu.memory_space<smem>>, %arg3: memref<3xi32, #tpu.memory_space<smem>>, %arg4: memref<3xi32, #tpu.memory_space<smem>>, %arg5: memref<3xi32, #tpu.memory_space<smem>>, %arg6: memref<3xi32, #tpu.memory_space<smem>>) -> (i32, i32) {
    %0 = arith.index_cast %arg0 : i32 to index
    %1 = memref.load %arg1[%0] : memref<3xi32, #tpu.memory_space<smem>>
    %c0_i32 = arith.constant 0 : i32
    %c0_i32_0 = arith.constant 0 : i32
    return %1, %c0_i32 : i32, i32
  }
  func.func @transform_3(%arg0: i32, %arg1: memref<3xi32, #tpu.memory_space<smem>>, %arg2: memref<3xi32, #tpu.memory_space<smem>>, %arg3: memref<3xi32, #tpu.memory_space<smem>>, %arg4: memref<3xi32, #tpu.memory_space<smem>>, %arg5: memref<3xi32, #tpu.memory_space<smem>>, %arg6: memref<3xi32, #tpu.memory_space<smem>>) -> (i32, i32) {
    %0 = arith.index_cast %arg0 : i32 to index
    %1 = memref.load %arg1[%0] : memref<3xi32, #tpu.memory_space<smem>>
    %c0_i32 = arith.constant 0 : i32
    %c0_i32_0 = arith.constant 0 : i32
    return %1, %c0_i32 : i32, i32
  }
  func.func @transform_4(%arg0: i32, %arg1: memref<3xi32, #tpu.memory_space<smem>>, %arg2: memref<3xi32, #tpu.memory_space<smem>>, %arg3: memref<3xi32, #tpu.memory_space<smem>>, %arg4: memref<3xi32, #tpu.memory_space<smem>>, %arg5: memref<3xi32, #tpu.memory_space<smem>>, %arg6: memref<3xi32, #tpu.memory_space<smem>>) -> (i32, i32) {
    %c0_i32 = arith.constant 0 : i32
    %c0_i32_0 = arith.constant 0 : i32
    %c0_i32_1 = arith.constant 0 : i32
    return %c0_i32, %c0_i32_0 : i32, i32
  }
  func.func @transform_5(%arg0: i32, %arg1: memref<3xi32, #tpu.memory_space<smem>>, %arg2: memref<3xi32, #tpu.memory_space<smem>>, %arg3: memref<3xi32, #tpu.memory_space<smem>>, %arg4: memref<3xi32, #tpu.memory_space<smem>>, %arg5: memref<3xi32, #tpu.memory_space<smem>>, %arg6: memref<3xi32, #tpu.memory_space<smem>>) -> (i32, i32) {
    %c0_i32 = arith.constant 0 : i32
    %c0_i32_0 = arith.constant 0 : i32
    %c0_i32_1 = arith.constant 0 : i32
    return %c0_i32, %c0_i32_0 : i32, i32
  }
  func.func @transform_6(%arg0: i32, %arg1: memref<3xi32, #tpu.memory_space<smem>>, %arg2: memref<3xi32, #tpu.memory_space<smem>>, %arg3: memref<3xi32, #tpu.memory_space<smem>>, %arg4: memref<3xi32, #tpu.memory_space<smem>>, %arg5: memref<3xi32, #tpu.memory_space<smem>>, %arg6: memref<3xi32, #tpu.memory_space<smem>>) -> (i32, i32) {
    %c0_i32 = arith.constant 0 : i32
    %c0_i32_0 = arith.constant 0 : i32
    %c0_i32_1 = arith.constant 0 : i32
    return %c0_i32, %c0_i32_0 : i32, i32
  }
  func.func @transform_7(%arg0: i32, %arg1: memref<3xi32, #tpu.memory_space<smem>>, %arg2: memref<3xi32, #tpu.memory_space<smem>>, %arg3: memref<3xi32, #tpu.memory_space<smem>>, %arg4: memref<3xi32, #tpu.memory_space<smem>>, %arg5: memref<3xi32, #tpu.memory_space<smem>>, %arg6: memref<3xi32, #tpu.memory_space<smem>>) -> (i32, i32) {
    %c0_i32 = arith.constant 0 : i32
    %c0_i32_0 = arith.constant 0 : i32
    %c0_i32_1 = arith.constant 0 : i32
    return %c0_i32, %c0_i32_0 : i32, i32
  }
  func.func @transform_8(%arg0: i32, %arg1: memref<3xi32, #tpu.memory_space<smem>>, %arg2: memref<3xi32, #tpu.memory_space<smem>>, %arg3: memref<3xi32, #tpu.memory_space<smem>>, %arg4: memref<3xi32, #tpu.memory_space<smem>>, %arg5: memref<3xi32, #tpu.memory_space<smem>>, %arg6: memref<3xi32, #tpu.memory_space<smem>>) -> (i32, i32) {
    %0 = arith.index_cast %arg0 : i32 to index
    %1 = memref.load %arg1[%0] : memref<3xi32, #tpu.memory_space<smem>>
    %c0_i32 = arith.constant 0 : i32
    %c0_i32_0 = arith.constant 0 : i32
    return %1, %c0_i32 : i32, i32
  }
  func.func @transform_9(%arg0: i32, %arg1: memref<3xi32, #tpu.memory_space<smem>>, %arg2: memref<3xi32, #tpu.memory_space<smem>>, %arg3: memref<3xi32, #tpu.memory_space<smem>>, %arg4: memref<3xi32, #tpu.memory_space<smem>>, %arg5: memref<3xi32, #tpu.memory_space<smem>>, %arg6: memref<3xi32, #tpu.memory_space<smem>>) -> (i32, i32) {
    %0 = arith.index_cast %arg0 : i32 to index
    %1 = memref.load %arg1[%0] : memref<3xi32, #tpu.memory_space<smem>>
    %c0_i32 = arith.constant 0 : i32
    %c0_i32_0 = arith.constant 0 : i32
    return %1, %c0_i32 : i32, i32
  }
}

</mosaic_0001>

<llo_original>
// kernel: tpu_custom_call.1
$region0: #{tpu_custom_call.1}
  #allocation0 [shape = 'u32[]', space=smem, size = 0x4, offset = 0x4, fixed_abs, tag = 'smem constant byte address 0x4 - core index']
  #allocation1 [shape = 'u32[144,128]{1,0:T(1,128)}', space=vmem, size = 0x12000, scoped, tag = 'internal scratch']
  #allocation2 [shape = 'f32[128,128]{1,0:T(8,128)}', space=vmem, size = 0x10000, scoped, tag = 'scratch operand']
  #allocation3 [shape = 's32[1]{0}', space=sflag, size = 0x4, scoped, tag = 'scoped memory for tpu_custom_call.1']
  #allocation4 [shape = 'u8[512]{0}', space=smem, size = 0x200, scoped, tag = 'prefetched SMEM operand 0']
  #allocation5 [shape = 'u8[512]{0}', space=smem, size = 0x200, scoped, tag = 'prefetched SMEM operand 1']
  #allocation6 [shape = 'u8[512]{0}', space=smem, size = 0x200, scoped, tag = 'prefetched SMEM operand 2']
  #allocation7 [shape = 'u8[512]{0}', space=smem, size = 0x200, scoped, tag = 'prefetched SMEM operand 3']
  #allocation8 [shape = 'u8[512]{0}', space=smem, size = 0x200, scoped, tag = 'prefetched SMEM operand 4']
  #allocation9 [shape = 'u8[512]{0}', space=smem, size = 0x200, scoped, tag = 'prefetched SMEM operand 5']
  %s0 = inlined_call_operand.vmem [shape: s32[3], index: 0, kind: input, shape index: {}]
  %s1 = inlined_call_operand.vmem [shape: s32[3], index: 1, kind: input, shape index: {}]
  %s2 = inlined_call_operand.vmem [shape: s32[3], index: 2, kind: input, shape index: {}]
  %s3 = inlined_call_operand.vmem [shape: s32[3], index: 3, kind: input, shape index: {}]
  %s4 = inlined_call_operand.vmem [shape: s32[3], index: 4, kind: input, shape index: {}]
  %s5 = inlined_call_operand.vmem [shape: s32[3], index: 5, kind: input, shape index: {}]
  %s6 = inlined_call_operand.hbm [shape: s8[384,128], index: 6, kind: input, shape index: {}]
  %s7 = inlined_call_operand.vmem [shape: bf16[256,128], index: 7, kind: input, shape index: {}]
  %s8 = inlined_call_operand.vmem [shape: bf16[256,128], index: 8, kind: input, shape index: {}]
  %s9 = inlined_call_operand.vmem [shape: f32[256,1], index: 9, kind: input, shape index: {}]
  %s10 = inlined_call_operand.hbm [shape: bf16[128,128], index: 10, kind: input, shape index: {}]
  %s11 = inlined_call_operand.vmem [shape: f32[1,128], index: 11, kind: input, shape index: {}]
  %s12 = inlined_call_operand.hbm [shape: bf16[128,128], index: 12, kind: input, shape index: {}]
  %s13 = inlined_call_operand.vmem [shape: f32[1,128], index: 13, kind: input, shape index: {}]
  %s14 = inlined_call_operand.hbm [shape: bf16[256,128], index: 14, kind: output, shape index: {0}]
  %s15 = inlined_call_operand.hbm [shape: f32[256,128], index: 15, kind: output, shape index: {1}]
  %16 = xla_tuple %s14, %s15
  %s17 = sld [smem:[#allocation0]]
  $region97: #{tpu_custom_call.1} parent=0
    _
  %s19 = ssub.s32 1, %s17
  %s20 = scalar_select 0, %s19, %s17
  %s21 = sshll.u32 %s0, 4
  %s22 = int_to_ptr.vmem [resolvable:$true] %s21
  %24 = dma.vmem_to_smem %s22, 16, [#allocation4], [#allocation3]
  %s25 = sshll.u32 %s1, 4
  %s26 = int_to_ptr.vmem [resolvable:$true] %s25
  %28 = dma.vmem_to_smem %s26, 16, [#allocation5], [#allocation3]
  %s29 = sshll.u32 %s2, 4
  %s30 = int_to_ptr.vmem [resolvable:$true] %s29
  %32 = dma.vmem_to_smem %s30, 16, [#allocation6], [#allocation3]
  %s33 = sshll.u32 %s3, 4
  %s34 = int_to_ptr.vmem [resolvable:$true] %s33
  %36 = dma.vmem_to_smem %s34, 16, [#allocation7], [#allocation3]
  %s37 = sshll.u32 %s4, 4
  %s38 = int_to_ptr.vmem [resolvable:$true] %s37
  %40 = dma.vmem_to_smem %s38, 16, [#allocation8], [#allocation3]
  %s41 = sshll.u32 %s5, 4
  %s42 = int_to_ptr.vmem [resolvable:$true] %s41
  %44 = dma.vmem_to_smem %s42, 16, [#allocation9], [#allocation3]
  %45 = dma.done [#allocation3], 96
  %46 = sfence
  $region1: #{tpu_custom_call.1} parent=0
    #allocation10 [shape = 'u8[32768]{0}', space=vmem, size = 0x8000, scoped, tag = 'input window, operand 6']
    #allocation11 [shape = 's32[2]{0}', space=sflag, size = 0x8, scoped, tag = 'scoped memory for tpu_custom_call.1']
    #allocation12 [shape = 's32[2]{0}', space=sflag, size = 0x8, scoped, tag = 'scoped memory for tpu_custom_call.1']
    #allocation13 [shape = 'u8[32768]{0}', space=vmem, size = 0x8000, scoped, tag = 'input window, operand 10, single buffered']
    #allocation14 [shape = 's32[1]{0}', space=sflag, size = 0x4, scoped, tag = 'scoped memory for tpu_custom_call.1']
    #allocation15 [shape = 'u8[32768]{0}', space=vmem, size = 0x8000, scoped, tag = 'input window, operand 12, single buffered']
    #allocation16 [shape = 'u8[65536]{0}', space=vmem, size = 0x10000, scoped, tag = 'output window, operand 0']
    #allocation17 [shape = 'u8[131072]{0}', space=vmem, size = 0x20000, scoped, tag = 'output window, operand 1']
    #allocation18 [shape = 's32[2]{0}', space=sflag, size = 0x8, scoped, tag = 'scoped memory for tpu_custom_call.1']
    %47 = vsyncpa [#allocation11], 0
    %s48 = scalar_lea.sflag [#allocation11], 1
    %49 = vsyncpa %s48, 0
    %50 = vsyncpa [#allocation14], 0
    %51 = vsyncpa [#allocation12], 0
    %s52 = scalar_lea.sflag [#allocation12], 1
    %53 = vsyncpa %s52, 0
    %54 = vsyncpa [#allocation18], 0
    %s55 = scalar_lea.sflag [#allocation18], 1
    %56 = vsyncpa %s55, 0
    loop: start=0, step=1, limit=5
    $region2: #{tpu_custom_call.1} parent=1 // loop_pre_header
      _
    $region3: #{tpu_custom_call.1} parent=1 // loop_header
      %s58 = sphi 0, %s62
      %p59 = scmp.ge.s32.totalorder %s58, 5
      %s70 = sphi 0, %s72
      %s73 = sphi 0, %s70
      %s74 = sphi 0, %s73
      %s90 = sphi 0, %s74
      %s98 = sphi 0, %s100
      %s101 = sphi 0, %s98
      %s102 = sphi 0, %s101
      %s118 = sphi 0, %s102
      %s126 = sphi 0, %s128
      %s129 = sphi 0, %s126
      %s130 = sphi 0, %s129
      %s146 = sphi 0, %s130
      %s154 = sphi 0, %s156
      %s157 = sphi 0, %s154
      %s158 = sphi 0, %s157
      %s174 = sphi 0, %s158
      %s178 = sphi 0, %s178
      %s180 = sphi 0, %s178
      %s181 = sphi 0, %s180
      %s195 = sphi 0, %s181
      %s199 = sphi 0, %s199
      %s201 = sphi 0, %s199
      %s202 = sphi 0, %s201
      %s216 = sphi 0, %s202
      %s220 = sphi 0, %s220
      %s222 = sphi 0, %s220
      %s223 = sphi 0, %s222
      %s237 = sphi 0, %s223
      %s241 = sphi 0, %s241
      %s243 = sphi 0, %s241
      %s244 = sphi 0, %s243
      %s258 = sphi 0, %s244
      %s266 = sphi 0, %s268
      %s269 = sphi 0, %s266
      %s270 = sphi 0, %s269
      %s286 = sphi 0, %s270
      %s294 = sphi 0, %s296
      %s297 = sphi 0, %s294
      %s298 = sphi 0, %s297
      %s314 = sphi 0, %s298
    $region4: #{tpu_custom_call.1} parent=1 // loop_header_branch
      %61 = sbr.rel (%p59) target = $region8
    $region5: #{tpu_custom_call.1} parent=1 // loop_body
      %s63 = ssub.s32 %s58, 1
      %s64 = ssub.s32 %s58, 2
      %s65 = sadd.s32 %s58, 1
      %s66 = sld [smem:[#allocation6 + %s58]]
      %s67 = sld [smem:[#allocation6 + %s65]]
      %s68 = ssub.s32 %s66, %s67
      %p69 = scmp.eq.s32.totalorder %s68, 0
      %s71 = sadd.s32 %s70, 1
      %s72 = scalar_select %p69, %s70, %s71
      %p75 = pneg %p69
      %p76 = scmp.eq.s32.totalorder %s58, 2
      %p77 = por %p75, %p76
      %p78 = scmp.ne.s32.totalorder %s70, %s73
      %p79 = scmp.eq.s32.totalorder %s58, 0
      %p80 = por %p78, %p79
      %p81 = scmp.ne.s32.totalorder %s70, %s73
      %p82 = scmp.eq.s32.totalorder %s63, 2
      %p83 = por %p81, %p82
      %p84 = scmp.ne.s32.totalorder %s73, %s74
      %p85 = scmp.eq.s32.totalorder %s63, 0
      %p86 = por %p84, %p85
      %p87 = scmp.ne.s32.totalorder %s73, %s74
      %p88 = scmp.eq.s32.totalorder %s64, 2
      %p89 = por %p87, %p88
      %p91 = scmp.ne.s32.totalorder %s74, %s90
      %p92 = scmp.eq.s32.totalorder %s64, 0
      %p93 = por %p91, %p92
      %s94 = sld [smem:[#allocation5 + %s58]]
      %s95 = sld [smem:[#allocation5 + %s65]]
      %s96 = ssub.s32 %s94, %s95
      %p97 = scmp.eq.s32.totalorder %s96, 0
      %s99 = sadd.s32 %s98, 1
      %s100 = scalar_select %p97, %s98, %s99
      %p103 = pneg %p97
      %p104 = scmp.eq.s32.totalorder %s58, 2
      %p105 = por %p103, %p104
      %p106 = scmp.ne.s32.totalorder %s98, %s101
      %p107 = scmp.eq.s32.totalorder %s58, 0
      %p108 = por %p106, %p107
      %p109 = scmp.ne.s32.totalorder %s98, %s101
      %p110 = scmp.eq.s32.totalorder %s63, 2
      %p111 = por %p109, %p110
      %p112 = scmp.ne.s32.totalorder %s101, %s102
      %p113 = scmp.eq.s32.totalorder %s63, 0
      %p114 = por %p112, %p113
      %p115 = scmp.ne.s32.totalorder %s101, %s102
      %p116 = scmp.eq.s32.totalorder %s64, 2
      %p117 = por %p115, %p116
      %p119 = scmp.ne.s32.totalorder %s102, %s118
      %p120 = scmp.eq.s32.totalorder %s64, 0
      %p121 = por %p119, %p120
      %s122 = sld [smem:[#allocation4 + %s58]]
      %s123 = sld [smem:[#allocation4 + %s65]]
      %s124 = ssub.s32 %s122, %s123
      %p125 = scmp.eq.s32.totalorder %s124, 0
      %s127 = sadd.s32 %s126, 1
      %s128 = scalar_select %p125, %s126, %s127
      %p131 = pneg %p125
      %p132 = scmp.eq.s32.totalorder %s58, 2
      %p133 = por %p131, %p132
      %p134 = scmp.ne.s32.totalorder %s126, %s129
      %p135 = scmp.eq.s32.totalorder %s58, 0
      %p136 = por %p134, %p135
      %p137 = scmp.ne.s32.totalorder %s126, %s129
      %p138 = scmp.eq.s32.totalorder %s63, 2
      %p139 = por %p137, %p138
      %p140 = scmp.ne.s32.totalorder %s129, %s130
      %p141 = scmp.eq.s32.totalorder %s63, 0
      %p142 = por %p140, %p141
      %p143 = scmp.ne.s32.totalorder %s129, %s130
      %p144 = scmp.eq.s32.totalorder %s64, 2
      %p145 = por %p143, %p144
      %p147 = scmp.ne.s32.totalorder %s130, %s146
      %p148 = scmp.eq.s32.totalorder %s64, 0
      %p149 = por %p147, %p148
      %s150 = sld [smem:[#allocation4 + %s58]]
      %s151 = sld [smem:[#allocation4 + %s65]]
      %s152 = ssub.s32 %s150, %s151
      %p153 = scmp.eq.s32.totalorder %s152, 0
      %s155 = sadd.s32 %s154, 1
      %s156 = scalar_select %p153, %s154, %s155
      %p159 = pneg %p153
      %p160 = scmp.eq.s32.totalorder %s58, 2
      %p161 = por %p159, %p160
      %p162 = scmp.ne.s32.totalorder %s154, %s157
      %p163 = scmp.eq.s32.totalorder %s58, 0
      %p164 = por %p162, %p163
      %p165 = scmp.ne.s32.totalorder %s154, %s157
      %p166 = scmp.eq.s32.totalorder %s63, 2
      %p167 = por %p165, %p166
      %p168 = scmp.ne.s32.totalorder %s157, %s158
      %p169 = scmp.eq.s32.totalorder %s63, 0
      %p170 = por %p168, %p169
      %p171 = scmp.ne.s32.totalorder %s157, %s158
      %p172 = scmp.eq.s32.totalorder %s64, 2
      %p173 = por %p171, %p172
      %p175 = scmp.ne.s32.totalorder %s158, %s174
      %p176 = scmp.eq.s32.totalorder %s64, 0
      %p177 = por %p175, %p176
      %s179 = sadd.s32 %s178, 1
      %p182 = scmp.eq.s32.totalorder %s58, 2
      %p183 = scmp.ne.s32.totalorder %s178, %s180
      %p184 = scmp.eq.s32.totalorder %s58, 0
      %p185 = por %p183, %p184
      %p186 = scmp.ne.s32.totalorder %s178, %s180
      %p187 = scmp.eq.s32.totalorder %s63, 2
      %p188 = por %p186, %p187
      %p189 = scmp.ne.s32.totalorder %s180, %s181
      %p190 = scmp.eq.s32.totalorder %s63, 0
      %p191 = por %p189, %p190
      %p192 = scmp.ne.s32.totalorder %s180, %s181
      %p193 = scmp.eq.s32.totalorder %s64, 2
      %p194 = por %p192, %p193
      %p196 = scmp.ne.s32.totalorder %s181, %s195
      %p197 = scmp.eq.s32.totalorder %s64, 0
      %p198 = por %p196, %p197
      %s200 = sadd.s32 %s199, 1
      %p203 = scmp.eq.s32.totalorder %s58, 2
      %p204 = scmp.ne.s32.totalorder %s199, %s201
      %p205 = scmp.eq.s32.totalorder %s58, 0
      %p206 = por %p204, %p205
      %p207 = scmp.ne.s32.totalorder %s199, %s201
      %p208 = scmp.eq.s32.totalorder %s63, 2
      %p209 = por %p207, %p208
      %p210 = scmp.ne.s32.totalorder %s201, %s202
      %p211 = scmp.eq.s32.totalorder %s63, 0
      %p212 = por %p210, %p211
      %p213 = scmp.ne.s32.totalorder %s201, %s202
      %p214 = scmp.eq.s32.totalorder %s64, 2
      %p215 = por %p213, %p214
      %p217 = scmp.ne.s32.totalorder %s202, %s216
      %p218 = scmp.eq.s32.totalorder %s64, 0
      %p219 = por %p217, %p218
      %s221 = sadd.s32 %s220, 1
      %p224 = scmp.eq.s32.totalorder %s58, 2
      %p225 = scmp.ne.s32.totalorder %s220, %s222
      %p226 = scmp.eq.s32.totalorder %s58, 0
      %p227 = por %p225, %p226
      %p228 = scmp.ne.s32.totalorder %s220, %s222
      %p229 = scmp.eq.s32.totalorder %s63, 2
      %p230 = por %p228, %p229
      %p231 = scmp.ne.s32.totalorder %s222, %s223
      %p232 = scmp.eq.s32.totalorder %s63, 0
      %p233 = por %p231, %p232
      %p234 = scmp.ne.s32.totalorder %s222, %s223
      %p235 = scmp.eq.s32.totalorder %s64, 2
      %p236 = por %p234, %p235
      %p238 = scmp.ne.s32.totalorder %s223, %s237
      %p239 = scmp.eq.s32.totalorder %s64, 0
      %p240 = por %p238, %p239
      %s242 = sadd.s32 %s241, 1
      %p245 = scmp.eq.s32.totalorder %s58, 2
      %p246 = scmp.ne.s32.totalorder %s241, %s243
      %p247 = scmp.eq.s32.totalorder %s58, 0
      %p248 = por %p246, %p247
      %p249 = scmp.ne.s32.totalorder %s241, %s243
      %p250 = scmp.eq.s32.totalorder %s63, 2
      %p251 = por %p249, %p250
      %p252 = scmp.ne.s32.totalorder %s243, %s244
      %p253 = scmp.eq.s32.totalorder %s63, 0
      %p254 = por %p252, %p253
      %p255 = scmp.ne.s32.totalorder %s243, %s244
      %p256 = scmp.eq.s32.totalorder %s64, 2
      %p257 = por %p255, %p256
      %p259 = scmp.ne.s32.totalorder %s244, %s258
      %p260 = scmp.eq.s32.totalorder %s64, 0
      %p261 = por %p259, %p260
      %s262 = sld [smem:[#allocation4 + %s58]]
      %s263 = sld [smem:[#allocation4 + %s65]]
      %s264 = ssub.s32 %s262, %s263
      %p265 = scmp.eq.s32.totalorder %s264, 0
      %s267 = sadd.s32 %s266, 1
      %s268 = scalar_select %p265, %s266, %s267
      %p271 = pneg %p265
      %p272 = scmp.eq.s32.totalorder %s58, 2
      %p273 = por %p271, %p272
      %p274 = scmp.ne.s32.totalorder %s266, %s269
      %p275 = scmp.eq.s32.totalorder %s58, 0
      %p276 = por %p274, %p275
      %p277 = scmp.ne.s32.totalorder %s266, %s269
      %p278 = scmp.eq.s32.totalorder %s63, 2
      %p279 = por %p277, %p278
      %p280 = scmp.ne.s32.totalorder %s269, %s270
      %p281 = scmp.eq.s32.totalorder %s63, 0
      %p282 = por %p280, %p281
      %p283 = scmp.ne.s32.totalorder %s269, %s270
      %p284 = scmp.eq.s32.totalorder %s64, 2
      %p285 = por %p283, %p284
      %p287 = scmp.ne.s32.totalorder %s270, %s286
      %p288 = scmp.eq.s32.totalorder %s64, 0
      %p289 = por %p287, %p288
      %s290 = sld [smem:[#allocation4 + %s58]]
      %s291 = sld [smem:[#allocation4 + %s65]]
      %s292 = ssub.s32 %s290, %s291
      %p293 = scmp.eq.s32.totalorder %s292, 0
      %s295 = sadd.s32 %s294, 1
      %s296 = scalar_select %p293, %s294, %s295
      %p299 = pneg %p293
      %p300 = scmp.eq.s32.totalorder %s58, 2
      %p301 = por %p299, %p300
      %p302 = scmp.ne.s32.totalorder %s294, %s297
      %p303 = scmp.eq.s32.totalorder %s58, 0
      %p304 = por %p302, %p303
      %p305 = scmp.ne.s32.totalorder %s294, %s297
      %p306 = scmp.eq.s32.totalorder %s63, 2
      %p307 = por %p305, %p306
      %p308 = scmp.ne.s32.totalorder %s297, %s298
      %p309 = scmp.eq.s32.totalorder %s63, 0
      %p310 = por %p308, %p309
      %p311 = scmp.ne.s32.totalorder %s297, %s298
      %p312 = scmp.eq.s32.totalorder %s64, 2
      %p313 = por %p311, %p312
      %p315 = scmp.ne.s32.totalorder %s298, %s314
      %p316 = scmp.eq.s32.totalorder %s64, 0
      %p317 = por %p315, %p316
      %p318 = scmp.le.s32.totalorder 1, %s58
      %p319 = scmp.lt.s32.totalorder %s58, 4
      %p320 = pnand %p318, %p319
      %p321 = pneg %p320
      // Predicated region
      $region9: #{tpu_custom_call.1} parent=5 // pred_check
        _
      $region10: #{tpu_custom_call.1} parent=5 // pred_check_branch
        %323 = sbr.rel (%p320) target = $region12
      $region11: #{tpu_custom_call.1} parent=5 // pred_region
        %s324 = ssub.s32 %s58, 1
        // Predicated region
        $region13: #{tpu_custom_call.1} parent=11 // pred_check
          %p325 = pneg %p191
        $region14: #{tpu_custom_call.1} parent=11 // pred_check_branch
          %327 = sbr.rel (%p325) target = $region16
        $region15: #{tpu_custom_call.1} parent=11 // pred_region
          %s329 = ssub.s32 1024, 1024
          %330 = vsyncadd [#allocation14], %s329
          %s331 = sshll.u32 [#allocation13], 4
          %s332 = int_to_ptr.vmem [resolvable:$true] %s331
          %337 = dma.hbm_to_vmem [thread:$0]  %s10, 1024, %s332, [#allocation14], 64, 64, 4
        $region16: #{tpu_custom_call.1} parent=11 // pred_fallthru
          _
        // Predicated region
        $region17: #{tpu_custom_call.1} parent=11 // pred_check
          %p338 = pneg %p212
        $region18: #{tpu_custom_call.1} parent=11 // pred_check_branch
          %340 = sbr.rel (%p338) target = $region20
        $region19: #{tpu_custom_call.1} parent=11 // pred_region
          _
        $region20: #{tpu_custom_call.1} parent=11 // pred_fallthru
          _
        // Predicated region
        $region21: #{tpu_custom_call.1} parent=11 // pred_check
          %p341 = pneg %p233
        $region22: #{tpu_custom_call.1} parent=11 // pred_check_branch
          %343 = sbr.rel (%p341) target = $region24
        $region23: #{tpu_custom_call.1} parent=11 // pred_region
          %s345 = ssub.s32 1024, 1024
          %346 = vsyncadd [#allocation14], %s345
          %s347 = sshll.u32 [#allocation15], 4
          %s348 = int_to_ptr.vmem [resolvable:$true] %s347
          %353 = dma.hbm_to_vmem [thread:$0]  %s12, 1024, %s348, [#allocation14], 64, 64, 4
        $region24: #{tpu_custom_call.1} parent=11 // pred_fallthru
          _
        // Predicated region
        $region25: #{tpu_custom_call.1} parent=11 // pred_check
          %p354 = pneg %p254
        $region26: #{tpu_custom_call.1} parent=11 // pred_check_branch
          %356 = sbr.rel (%p354) target = $region28
        $region27: #{tpu_custom_call.1} parent=11 // pred_region
          _
        $region28: #{tpu_custom_call.1} parent=11 // pred_fallthru
          _
      $region12: #{tpu_custom_call.1} parent=5 // pred_fallthru
        _
      %p357 = scmp.lt.s32.totalorder %s58, 3
      // Predicated region
      $region29: #{tpu_custom_call.1} parent=5 // pred_check
        %p358 = pneg %p357
      $region30: #{tpu_custom_call.1} parent=5 // pred_check_branch
        %360 = sbr.rel (%p358) target = $region32
      $region31: #{tpu_custom_call.1} parent=5 // pred_region
        // Predicated region
        $region33: #{tpu_custom_call.1} parent=31 // pred_check
          %p361 = pneg %p80
        $region34: #{tpu_custom_call.1} parent=31 // pred_check_branch
          %363 = sbr.rel (%p361) target = $region36
        $region35: #{tpu_custom_call.1} parent=31 // pred_region
          %s364 = sand.u32 %s70, 1
          %s365 = scalar_lea.sflag [#allocation11], %s364
          %s366 = sand.u32 %s70, 1
          %s367 = smul.addr %s366, 32
          %s368 = scalar_lea.vmem [#allocation10], %s367
          %s369 = sld [smem:[#allocation6 + %s58]]
          %s370 = smul.u32 4, %s369
          %s372 = ssub.s32 512, 512
          %373 = vsyncadd %s365, %s372
          %s374 = smul.addr %s370, 128
          %s375 = scalar_lea.hbm %s6, %s374
          %s376 = sshll.u32 %s368, 4
          %s377 = int_to_ptr.vmem [resolvable:$true] %s376
          %382 = dma.hbm_to_vmem [thread:$0]  %s375, 512, %s377, %s365, 128, 128, 8
        $region36: #{tpu_custom_call.1} parent=31 // pred_fallthru
          _
        // Predicated region
        $region37: #{tpu_custom_call.1} parent=31 // pred_check
          %p383 = pneg %p108
        $region38: #{tpu_custom_call.1} parent=31 // pred_check_branch
          %385 = sbr.rel (%p383) target = $region40
        $region39: #{tpu_custom_call.1} parent=31 // pred_region
          %s386 = sld [smem:[#allocation5 + %s58]]
          %s387 = smul.u32 16, %s386
          %p388 = scmp.lt.s32.totalorder %s387, 31
          %s389 = scalar_select %p388, %s387, 31
          %s390 = smul.addr %s389, 4
          %s391 = scalar_lea.vmem %s7, %s390
          %s392 = sld [smem:[#allocation5 + %s58]]
          %s393 = smul.u32 16, %s392
        $region40: #{tpu_custom_call.1} parent=31 // pred_fallthru
          _
        // Predicated region
        $region41: #{tpu_custom_call.1} parent=31 // pred_check
          %p394 = pneg %p136
        $region42: #{tpu_custom_call.1} parent=31 // pred_check_branch
          %396 = sbr.rel (%p394) target = $region44
        $region43: #{tpu_custom_call.1} parent=31 // pred_region
          %s397 = sld [smem:[#allocation4 + %s58]]
          %s398 = smul.u32 16, %s397
          %p399 = scmp.lt.s32.totalorder %s398, 31
          %s400 = scalar_select %p399, %s398, 31
          %s401 = smul.addr %s400, 4
          %s402 = scalar_lea.vmem %s8, %s401
          %s403 = sld [smem:[#allocation4 + %s58]]
          %s404 = smul.u32 16, %s403
        $region44: #{tpu_custom_call.1} parent=31 // pred_fallthru
          _
        // Predicated region
        $region45: #{tpu_custom_call.1} parent=31 // pred_check
          %p405 = pneg %p164
        $region46: #{tpu_custom_call.1} parent=31 // pred_check_branch
          %407 = sbr.rel (%p405) target = $region48
        $region47: #{tpu_custom_call.1} parent=31 // pred_region
          %s408 = sld [smem:[#allocation4 + %s58]]
          %s409 = smul.u32 16, %s408
          %p410 = scmp.lt.s32.totalorder %s409, 31
          %s411 = scalar_select %p410, %s409, 31
          %s412 = smul.addr %s411, 8
          %s413 = scalar_lea.vmem %s9, %s412
          %s414 = sld [smem:[#allocation4 + %s58]]
          %s415 = smul.u32 16, %s414
        $region48: #{tpu_custom_call.1} parent=31 // pred_fallthru
          _
      $region32: #{tpu_custom_call.1} parent=5 // pred_fallthru
        _
      %p416 = scmp.le.s32.totalorder 1, %s58
      %p417 = scmp.lt.s32.totalorder %s58, 4
      %p418 = pnand %p416, %p417
      %p419 = pneg %p418
      // Predicated region
      $region49: #{tpu_custom_call.1} parent=5 // pred_check
        _
      $region50: #{tpu_custom_call.1} parent=5 // pred_check_branch
        %421 = sbr.rel (%p418) target = $region52
      $region51: #{tpu_custom_call.1} parent=5 // pred_region
        %s422 = ssub.s32 %s58, 1
        %s423 = sand.u32 %s73, 1
        %s424 = scalar_lea.sflag [#allocation11], %s423
        %s425 = sand.u32 %s73, 1
        %s426 = smul.addr %s425, 32
        %s427 = scalar_lea.vmem [#allocation10], %s426
        // Predicated region
        $region53: #{tpu_custom_call.1} parent=51 // pred_check
          %p428 = pneg %p86
        $region54: #{tpu_custom_call.1} parent=51 // pred_check_branch
          %430 = sbr.rel (%p428) target = $region56
        $region55: #{tpu_custom_call.1} parent=51 // pred_region
          %431 = dma.done %s424, 512
        $region56: #{tpu_custom_call.1} parent=51 // pred_fallthru
          _
        // Predicated region
        $region57: #{tpu_custom_call.1} parent=51 // pred_check
          %p432 = pneg %p191
        $region58: #{tpu_custom_call.1} parent=51 // pred_check_branch
          %434 = sbr.rel (%p432) target = $region60
        $region59: #{tpu_custom_call.1} parent=51 // pred_region
          %435 = dma.done [#allocation14], 1024
        $region60: #{tpu_custom_call.1} parent=51 // pred_fallthru
          _
        // Predicated region
        $region61: #{tpu_custom_call.1} parent=51 // pred_check
          %p436 = pneg %p233
        $region62: #{tpu_custom_call.1} parent=51 // pred_check_branch
          %438 = sbr.rel (%p436) target = $region64
        $region63: #{tpu_custom_call.1} parent=51 // pred_region
          %439 = dma.done [#allocation14], 1024
        $region64: #{tpu_custom_call.1} parent=51 // pred_fallthru
          _
        %s440 = sand.u32 %s73, 1
        %s441 = scalar_lea.sflag [#allocation11], %s440
        %s442 = sand.u32 %s73, 1
        %s443 = smul.addr %s442, 32
        %s444 = scalar_lea.vmem [#allocation10], %s443
        %p445 = pneg %p86
        %p446 = pneg %p83
        %s447 = sld [smem:[#allocation5 + %s63]]
        %s448 = smul.u32 16, %s447
        %p449 = scmp.lt.s32.totalorder %s448, 31
        %s450 = scalar_select %p449, %s448, 31
        %s451 = smul.addr %s450, 4
        %s452 = scalar_lea.vmem %s7, %s451
        %p453 = pneg %p114
        %p454 = pneg %p111
        %s455 = sld [smem:[#allocation4 + %s63]]
        %s456 = smul.u32 16, %s455
        %p457 = scmp.lt.s32.totalorder %s456, 31
        %s458 = scalar_select %p457, %s456, 31
        %s459 = smul.addr %s458, 4
        %s460 = scalar_lea.vmem %s8, %s459
        %p461 = pneg %p142
        %p462 = pneg %p139
        %s463 = sld [smem:[#allocation4 + %s63]]
        %s464 = smul.u32 16, %s463
        %p465 = scmp.lt.s32.totalorder %s464, 31
        %s466 = scalar_select %p465, %s464, 31
        %s467 = smul.addr %s466, 8
        %s468 = scalar_lea.vmem %s9, %s467
        %p469 = pneg %p170
        %p470 = pneg %p167
        %p471 = pneg %p191
        %p472 = pneg %p188
        %p473 = pneg %p212
        %p474 = pneg %p209
        %p475 = pneg %p233
        %p476 = pneg %p230
        %p477 = pneg %p254
        %p478 = pneg %p251
        %p479 = pneg %p282
        %p480 = pneg %p279
        %s481 = sand.u32 %s269, 1
        %s482 = scalar_lea.sflag [#allocation12], %s481
        %s483 = sand.u32 %s269, 1
        %s484 = smul.addr %s483, 64
        %s485 = scalar_lea.vmem [#allocation16], %s484
        %p486 = pneg %p310
        %p487 = pneg %p307
        %s488 = sand.u32 %s297, 1
        %s489 = scalar_lea.sflag [#allocation18], %s488
        %s490 = sand.u32 %s297, 1
        %s491 = smul.addr %s490, 128
        %s492 = scalar_lea.vmem [#allocation17], %s491
        %s493 = sld [smem:[#allocation6 + %s63]]
        %s494 = smul.u32 4, %s493
        %s495 = sld [smem:[#allocation5 + %s63]]
        %s496 = smul.u32 16, %s495
        %p497 = scmp.lt.s32.totalorder %s496, 31
        %s498 = scalar_select %p497, %s496, 31
        %s499 = smul.addr %s498, 4
        %s500 = scalar_lea.vmem %s7, %s499
        %s501 = sld [smem:[#allocation5 + %s63]]
        %s502 = smul.u32 16, %s501
        %s503 = sld [smem:[#allocation4 + %s63]]
        %s504 = smul.u32 16, %s503
        %p505 = scmp.lt.s32.totalorder %s504, 31
        %s506 = scalar_select %p505, %s504, 31
        %s507 = smul.addr %s506, 4
        %s508 = scalar_lea.vmem %s8, %s507
        %s509 = sld [smem:[#allocation4 + %s63]]
        %s510 = smul.u32 16, %s509
        %s511 = sld [smem:[#allocation4 + %s63]]
        %s512 = smul.u32 16, %s511
        %p513 = scmp.lt.s32.totalorder %s512, 31
        %s514 = scalar_select %p513, %s512, 31
        %s515 = smul.addr %s514, 8
        %s516 = scalar_lea.vmem %s9, %s515
        %s517 = sld [smem:[#allocation4 + %s63]]
        %s518 = smul.u32 16, %s517
        %s519 = sld [smem:[#allocation4 + %s63]]
        %s520 = smul.u32 16, %s519
        %s521 = sld [smem:[#allocation4 + %s63]]
        %s522 = smul.u32 16, %s521
        %s524 = sld [smem:[#allocation7 + %s63]]
        %p525 = scmp.eq.s32.totalorder %s524, 1
        // Predicated region
        $region65: #{tpu_custom_call.1} parent=51 // pred_check
          %p526 = pneg %p525
        $region66: #{tpu_custom_call.1} parent=51 // pred_check_branch
          %528 = sbr.rel (%p526) target = $region68
        $region67: #{tpu_custom_call.1} parent=51 // pred_region
          %529 = vst [vmem:[#allocation2] sm:$0xff] 0.0
          %530 = vst [vmem:[#allocation2 + $0x8] sm:$0xff] 0.0
          %531 = vst [vmem:[#allocation2 + $0x10] sm:$0xff] 0.0
          %532 = vst [vmem:[#allocation2 + $0x18] sm:$0xff] 0.0
          %533 = vst [vmem:[#allocation2 + $0x20] sm:$0xff] 0.0
          %534 = vst [vmem:[#allocation2 + $0x28] sm:$0xff] 0.0
          %535 = vst [vmem:[#allocation2 + $0x30] sm:$0xff] 0.0
          %536 = vst [vmem:[#allocation2 + $0x38] sm:$0xff] 0.0
          %537 = vst [vmem:[#allocation2 + $0x40] sm:$0xff] 0.0
          %538 = vst [vmem:[#allocation2 + $0x48] sm:$0xff] 0.0
          %539 = vst [vmem:[#allocation2 + $0x50] sm:$0xff] 0.0
          %540 = vst [vmem:[#allocation2 + $0x58] sm:$0xff] 0.0
          %541 = vst [vmem:[#allocation2 + $0x60] sm:$0xff] 0.0
          %542 = vst [vmem:[#allocation2 + $0x68] sm:$0xff] 0.0
          %543 = vst [vmem:[#allocation2 + $0x70] sm:$0xff] 0.0
          %544 = vst [vmem:[#allocation2 + $0x78] sm:$0xff] 0.0
        $region68: #{tpu_custom_call.1} parent=51 // pred_fallthru
          _
        %s545 = sld [smem:[#allocation9 + %s63]]
        %p546 = scmp.eq.s32.totalorder %s545, 1
        // Predicated region
        $region69: #{tpu_custom_call.1} parent=51 // pred_check
          %p547 = pneg %p546
        $region70: #{tpu_custom_call.1} parent=51 // pred_check_branch
          %549 = sbr.rel (%p547) target = $region72
        $region71: #{tpu_custom_call.1} parent=51 // pred_region
          %v550 = vld [vmem:[#allocation2] sm:$0xff]
          %v551 = vld [vmem:[#allocation2 + $0x8] sm:$0xff]
          %v552 = vld [vmem:[#allocation2 + $0x10] sm:$0xff]
          %v553 = vld [vmem:[#allocation2 + $0x18] sm:$0xff]
          %v554 = vld [vmem:[#allocation2 + $0x20] sm:$0xff]
          %v555 = vld [vmem:[#allocation2 + $0x28] sm:$0xff]
          %v556 = vld [vmem:[#allocation2 + $0x30] sm:$0xff]
          %v557 = vld [vmem:[#allocation2 + $0x38] sm:$0xff]
          %v558 = vld [vmem:[#allocation2 + $0x40] sm:$0xff]
          %v559 = vld [vmem:[#allocation2 + $0x48] sm:$0xff]
          %v560 = vld [vmem:[#allocation2 + $0x50] sm:$0xff]
          %v561 = vld [vmem:[#allocation2 + $0x58] sm:$0xff]
          %v562 = vld [vmem:[#allocation2 + $0x60] sm:$0xff]
          %v563 = vld [vmem:[#allocation2 + $0x68] sm:$0xff]
          %v564 = vld [vmem:[#allocation2 + $0x70] sm:$0xff]
          %v565 = vld [vmem:[#allocation2 + $0x78] sm:$0xff]
          %v566 = vld [vmem:[%s427] sm:$0xff]
          %v567 = vld [vmem:[%s427 + $0x8] sm:$0xff]
          %v568 = vld [vmem:[%s427 + $0x10] sm:$0xff]
          %v569 = vld [vmem:[%s427 + $0x18] sm:$0xff]
          %v570 = vunpack.c.l.s8.bf16 %v566
          %v571 = vunpack.c.h.s8.bf16 %v566
          %v572 = vunpack.c.l.s8.bf16 %v567
          %v573 = vunpack.c.h.s8.bf16 %v567
          %v574 = vunpack.c.l.s8.bf16 %v568
          %v575 = vunpack.c.h.s8.bf16 %v568
          %v576 = vunpack.c.l.s8.bf16 %v569
          %v577 = vunpack.c.h.s8.bf16 %v569
          %v578 = vld [vmem:[%s500] sm:$0xf]
          %v579 = vld [vmem:[%s500 + $0x4] sm:$0xf]
          %v580 = vld [vmem:[%s500 + $0x8] sm:$0xf]
          %v581 = vld [vmem:[%s500 + $0xc] sm:$0xf]
          %v582 = vld [vmem:[%s500 + $0x10] sm:$0xf]
          %v583 = vld [vmem:[%s500 + $0x14] sm:$0xf]
          %v584 = vld [vmem:[%s500 + $0x18] sm:$0xf]
          %v585 = vld [vmem:[%s500 + $0x1c] sm:$0xf]
          %v586 = vld [vmem:[%s500 + $0x20] sm:$0xf]
          %v587 = vld [vmem:[%s500 + $0x24] sm:$0xf]
          %v588 = vld [vmem:[%s500 + $0x28] sm:$0xf]
          %v589 = vld [vmem:[%s500 + $0x2c] sm:$0xf]
          %v590 = vld [vmem:[%s500 + $0x30] sm:$0xf]
          %v591 = vld [vmem:[%s500 + $0x34] sm:$0xf]
          %v592 = vld [vmem:[%s500 + $0x38] sm:$0xf]
          %v593 = vld [vmem:[%s500 + $0x3c] sm:$0xf]
          %v610 = vunpack.c.l.b16 %v578
          %v611 = vunpack.c.l.b16 %v579
          %v612 = vunpack.c.l.b16 %v580
          %v613 = vunpack.c.l.b16 %v581
          %v614 = vunpack.c.l.b16 %v582
          %v615 = vunpack.c.l.b16 %v583
          %v616 = vunpack.c.l.b16 %v584
          %v617 = vunpack.c.l.b16 %v585
          %v618 = vunpack.c.l.b16 %v586
          %v619 = vunpack.c.l.b16 %v587
          %v620 = vunpack.c.l.b16 %v588
          %v621 = vunpack.c.l.b16 %v589
          %v622 = vunpack.c.l.b16 %v590
          %v623 = vunpack.c.l.b16 %v591
          %v624 = vunpack.c.l.b16 %v592
          %v625 = vunpack.c.l.b16 %v593
          %v626 = vpack.c.b16 %v611, %v610
          %v627 = vpack.c.b16 %v613, %v612
          %v628 = vpack.c.b16 %v615, %v614
          %v629 = vpack.c.b16 %v617, %v616
          %v630 = vpack.c.b16 %v619, %v618
          %v631 = vpack.c.b16 %v621, %v620
          %v632 = vpack.c.b16 %v623, %v622
          %v633 = vpack.c.b16 %v625, %v624
          %642 = vmatprep.subr.bf16.mxu0 0
          %643 = vmatpush1.bf16.msra.mxu0 %v626
          %644 = vmatprep.subr.bf16.mxu0 0
          %645 = vmatpush1.bf16.msra.mxu0 %v627
          %646 = vmatprep.subr.bf16.mxu0 0
          %647 = vmatpush1.bf16.msra.mxu0 %v628
          %648 = vmatprep.subr.bf16.mxu0 0
          %649 = vmatpush1.bf16.msra.mxu0 %v629
          %650 = vmatprep.subr.bf16.mxu0 0
          %651 = vmatpush1.bf16.msra.mxu0 %v630
          %652 = vmatprep.subr.bf16.mxu0 0
          %653 = vmatpush1.bf16.msra.mxu0 %v631
          %654 = vmatprep.subr.bf16.mxu0 0
          %655 = vmatpush1.bf16.msra.mxu0 %v632
          %656 = vmatprep.subr.bf16.mxu0 0
          %657 = vmatpush1.bf16.msra.mxu0 %v633
          %658 = vmatprep.subr.bf16.mxu0 0
          %659 = vmatpush1.bf16.msra.mxu0 0
          %660 = vmatprep.subr.bf16.mxu0 0
          %661 = vmatpush1.bf16.msra.mxu0 0
          %662 = vmatprep.subr.bf16.mxu0 0
          %663 = vmatpush1.bf16.msra.mxu0 0
          %664 = vmatprep.subr.bf16.mxu0 0
          %665 = vmatpush1.bf16.msra.mxu0 0
          %666 = vmatprep.subr.bf16.mxu0 0
          %667 = vmatpush1.bf16.msra.mxu0 0
          %668 = vmatprep.subr.bf16.mxu0 0
          %669 = vmatpush1.bf16.msra.mxu0 0
          %670 = vmatprep.subr.bf16.mxu0 0
          %671 = vmatpush1.bf16.msra.mxu0 0
          %672 = vmatprep.subr.bf16.mxu0 0
          %673 = vmatpush1.bf16.msra.mxu0 0
          %674 = vmatprep.mubr.bf16.mxu0 0
          %675 = vmatmul.mubr.bf16.gmra.mrb[0].mxu0 %v570
          %v676 = vpop.f32.mrb[0].mxu0
          %v677 = vadd.f32 0.0, %v676
          %v678 = vpop.f32.mrb[0].mxu0
          %v679 = vpop.f32.mrb[0].mxu0
          %v680 = vadd.f32 0.0, %v679
          %v681 = vpop.f32.mrb[0].mxu0
          %682 = vmatprep.mubr.bf16.mxu0 0
          %683 = vmatmul.mubr.bf16.gmra.mrb[0].mxu0 %v571
          %v684 = vpop.f32.mrb[0].mxu0
          %v685 = vadd.f32 0.0, %v684
          %v686 = vpop.f32.mrb[0].mxu0
          %v687 = vpop.f32.mrb[0].mxu0
          %v688 = vadd.f32 0.0, %v687
          %v689 = vpop.f32.mrb[0].mxu0
          %690 = vmatprep.mubr.bf16.mxu0 0
          %691 = vmatmul.mubr.bf16.gmra.mrb[0].mxu0 %v572
          %v692 = vpop.f32.mrb[0].mxu0
          %v693 = vadd.f32 0.0, %v692
          %v694 = vpop.f32.mrb[0].mxu0
          %v695 = vpop.f32.mrb[0].mxu0
          %v696 = vadd.f32 0.0, %v695
          %v697 = vpop.f32.mrb[0].mxu0
          %698 = vmatprep.mubr.bf16.mxu0 0
          %699 = vmatmul.mubr.bf16.gmra.mrb[0].mxu0 %v573
          %v700 = vpop.f32.mrb[0].mxu0
          %v701 = vadd.f32 0.0, %v700
          %v702 = vpop.f32.mrb[0].mxu0
          %v703 = vpop.f32.mrb[0].mxu0
          %v704 = vadd.f32 0.0, %v703
          %v705 = vpop.f32.mrb[0].mxu0
          %706 = vmatprep.mubr.bf16.mxu0 0
          %707 = vmatmul.mubr.bf16.gmra.mrb[0].mxu0 %v574
          %v708 = vpop.f32.mrb[0].mxu0
          %v709 = vadd.f32 0.0, %v708
          %v710 = vpop.f32.mrb[0].mxu0
          %v711 = vpop.f32.mrb[0].mxu0
          %v712 = vadd.f32 0.0, %v711
          %v713 = vpop.f32.mrb[0].mxu0
          %714 = vmatprep.mubr.bf16.mxu0 0
          %715 = vmatmul.mubr.bf16.gmra.mrb[0].mxu0 %v575
          %v716 = vpop.f32.mrb[0].mxu0
          %v717 = vadd.f32 0.0, %v716
          %v718 = vpop.f32.mrb[0].mxu0
          %v719 = vpop.f32.mrb[0].mxu0
          %v720 = vadd.f32 0.0, %v719
          %v721 = vpop.f32.mrb[0].mxu0
          %722 = vmatprep.mubr.bf16.mxu0 0
          %723 = vmatmul.mubr.bf16.gmra.mrb[0].mxu0 %v576
          %v724 = vpop.f32.mrb[0].mxu0
          %v725 = vadd.f32 0.0, %v724
          %v726 = vpop.f32.mrb[0].mxu0
          %v727 = vpop.f32.mrb[0].mxu0
          %v728 = vadd.f32 0.0, %v727
          %v729 = vpop.f32.mrb[0].mxu0
          %730 = vmatprep.mubr.bf16.mxu0 0
          %731 = vmatmul.mubr.bf16.gmra.mrb[0].mxu0 %v577
          %v732 = vpop.f32.mrb[0].mxu0
          %v733 = vadd.f32 0.0, %v732
          %v734 = vpop.f32.mrb[0].mxu0
          %v735 = vpop.f32.mrb[0].mxu0
          %v736 = vadd.f32 0.0, %v735
          %v737 = vpop.f32.mrb[0].mxu0
          %738 = vdwg.mxu0
          %v739 = vadd.f32 %v550, %v677
          %v740 = vadd.f32 %v551, %v680
          %v741 = vadd.f32 %v552, %v685
          %v742 = vadd.f32 %v553, %v688
          %v743 = vadd.f32 %v554, %v693
          %v744 = vadd.f32 %v555, %v696
          %v745 = vadd.f32 %v556, %v701
          %v746 = vadd.f32 %v557, %v704
          %v747 = vadd.f32 %v558, %v709
          %v748 = vadd.f32 %v559, %v712
          %v749 = vadd.f32 %v560, %v717
          %v750 = vadd.f32 %v561, %v720
          %v751 = vadd.f32 %v562, %v725
          %v752 = vadd.f32 %v563, %v728
          %v753 = vadd.f32 %v564, %v733
          %v754 = vadd.f32 %v565, %v736
          %755 = vst [vmem:[#allocation2] sm:$0xff] %v739
          %756 = vst [vmem:[#allocation2 + $0x8] sm:$0xff] %v740
          %757 = vst [vmem:[#allocation2 + $0x10] sm:$0xff] %v741
          %758 = vst [vmem:[#allocation2 + $0x18] sm:$0xff] %v742
          %759 = vst [vmem:[#allocation2 + $0x20] sm:$0xff] %v743
          %760 = vst [vmem:[#allocation2 + $0x28] sm:$0xff] %v744
          %761 = vst [vmem:[#allocation2 + $0x30] sm:$0xff] %v745
          %762 = vst [vmem:[#allocation2 + $0x38] sm:$0xff] %v746
          %763 = vst [vmem:[#allocation2 + $0x40] sm:$0xff] %v747
          %764 = vst [vmem:[#allocation2 + $0x48] sm:$0xff] %v748
          %765 = vst [vmem:[#allocation2 + $0x50] sm:$0xff] %v749
          %766 = vst [vmem:[#allocation2 + $0x58] sm:$0xff] %v750
          %767 = vst [vmem:[#allocation2 + $0x60] sm:$0xff] %v751
          %768 = vst [vmem:[#allocation2 + $0x68] sm:$0xff] %v752
          %769 = vst [vmem:[#allocation2 + $0x70] sm:$0xff] %v753
          %770 = vst [vmem:[#allocation2 + $0x78] sm:$0xff] %v754
        $region72: #{tpu_custom_call.1} parent=51 // pred_fallthru
          _
        %s771 = sld [smem:[#allocation8 + %s63]]
        %p772 = scmp.eq.s32.totalorder %s771, 1
        // Predicated region
        $region73: #{tpu_custom_call.1} parent=51 // pred_check
          %p773 = pneg %p772
        $region74: #{tpu_custom_call.1} parent=51 // pred_check_branch
          %775 = sbr.rel (%p773) target = $region76
        $region75: #{tpu_custom_call.1} parent=51 // pred_region
          %v776 = vld [vmem:[#allocation2] sm:$0xff]
          %v777 = vld [vmem:[#allocation2 + $0x8] sm:$0xff]
          %v778 = vld [vmem:[#allocation2 + $0x10] sm:$0xff]
          %v779 = vld [vmem:[#allocation2 + $0x18] sm:$0xff]
          %v780 = vld [vmem:[#allocation2 + $0x20] sm:$0xff]
          %v781 = vld [vmem:[#allocation2 + $0x28] sm:$0xff]
          %v782 = vld [vmem:[#allocation2 + $0x30] sm:$0xff]
          %v783 = vld [vmem:[#allocation2 + $0x38] sm:$0xff]
          %v784 = vld [vmem:[#allocation2 + $0x40] sm:$0xff]
          %v785 = vld [vmem:[#allocation2 + $0x48] sm:$0xff]
          %v786 = vld [vmem:[#allocation2 + $0x50] sm:$0xff]
          %v787 = vld [vmem:[#allocation2 + $0x58] sm:$0xff]
          %v788 = vld [vmem:[#allocation2 + $0x60] sm:$0xff]
          %v789 = vld [vmem:[#allocation2 + $0x68] sm:$0xff]
          %v790 = vld [vmem:[#allocation2 + $0x70] sm:$0xff]
          %v791 = vld [vmem:[#allocation2 + $0x78] sm:$0xff]
          %v792 = vld [vmem:[%s516] sm:$0xff]
          %v793 = vld [vmem:[%s516 + $0x8] sm:$0xff]
          %v794 = vld [vmem:[%s516 + $0x10] sm:$0xff]
          %v795 = vld [vmem:[%s516 + $0x18] sm:$0xff]
          %v796 = vld [vmem:[%s516 + $0x20] sm:$0xff]
          %v797 = vld [vmem:[%s516 + $0x28] sm:$0xff]
          %v798 = vld [vmem:[%s516 + $0x30] sm:$0xff]
          %v799 = vld [vmem:[%s516 + $0x38] sm:$0xff]
          %v800 = vld [vmem:[%s516 + $0x40] sm:$0xff]
          %v801 = vld [vmem:[%s516 + $0x48] sm:$0xff]
          %v802 = vld [vmem:[%s516 + $0x50] sm:$0xff]
          %v803 = vld [vmem:[%s516 + $0x58] sm:$0xff]
          %v804 = vld [vmem:[%s516 + $0x60] sm:$0xff]
          %v805 = vld [vmem:[%s516 + $0x68] sm:$0xff]
          %v806 = vld [vmem:[%s516 + $0x70] sm:$0xff]
          %v807 = vld [vmem:[%s516 + $0x78] sm:$0xff]
          %809 = vset.pattern.permute.xlu0 0
          %810 = vperm.xlu0 %809, %v792
          %v811 = vpop.permute.xlu0 %810
          %814 = vset.pattern.permute.xlu0 0
          %815 = vperm.xlu0 %814, %v793
          %v816 = vpop.permute.xlu0 %815
          %819 = vset.pattern.permute.xlu0 0
          %820 = vperm.xlu0 %819, %v794
          %v821 = vpop.permute.xlu0 %820
          %824 = vset.pattern.permute.xlu0 0
          %825 = vperm.xlu0 %824, %v795
          %v826 = vpop.permute.xlu0 %825
          %829 = vset.pattern.permute.xlu0 0
          %830 = vperm.xlu0 %829, %v796
          %v831 = vpop.permute.xlu0 %830
          %834 = vset.pattern.permute.xlu0 0
          %835 = vperm.xlu0 %834, %v797
          %v836 = vpop.permute.xlu0 %835
          %839 = vset.pattern.permute.xlu0 0
          %840 = vperm.xlu0 %839, %v798
          %v841 = vpop.permute.xlu0 %840
          %844 = vset.pattern.permute.xlu0 0
          %845 = vperm.xlu0 %844, %v799
          %v846 = vpop.permute.xlu0 %845
          %849 = vset.pattern.permute.xlu0 0
          %850 = vperm.xlu0 %849, %v800
          %v851 = vpop.permute.xlu0 %850
          %854 = vset.pattern.permute.xlu0 0
          %855 = vperm.xlu0 %854, %v801
          %v856 = vpop.permute.xlu0 %855
          %859 = vset.pattern.permute.xlu0 0
          %860 = vperm.xlu0 %859, %v802
          %v861 = vpop.permute.xlu0 %860
          %864 = vset.pattern.permute.xlu0 0
          %865 = vperm.xlu0 %864, %v803
          %v866 = vpop.permute.xlu0 %865
          %869 = vset.pattern.permute.xlu0 0
          %870 = vperm.xlu0 %869, %v804
          %v871 = vpop.permute.xlu0 %870
          %874 = vset.pattern.permute.xlu0 0
          %875 = vperm.xlu0 %874, %v805
          %v876 = vpop.permute.xlu0 %875
          %879 = vset.pattern.permute.xlu0 0
          %880 = vperm.xlu0 %879, %v806
          %v881 = vpop.permute.xlu0 %880
          %884 = vset.pattern.permute.xlu0 0
          %885 = vperm.xlu0 %884, %v807
          %v886 = vpop.permute.xlu0 %885
          %v888 = vmul.f32 %v776, %v811
          %v889 = vmul.f32 %v777, %v816
          %v890 = vmul.f32 %v778, %v821
          %v891 = vmul.f32 %v779, %v826
          %v892 = vmul.f32 %v780, %v831
          %v893 = vmul.f32 %v781, %v836
          %v894 = vmul.f32 %v782, %v841
          %v895 = vmul.f32 %v783, %v846
          %v896 = vmul.f32 %v784, %v851
          %v897 = vmul.f32 %v785, %v856
          %v898 = vmul.f32 %v786, %v861
          %v899 = vmul.f32 %v787, %v866
          %v900 = vmul.f32 %v788, %v871
          %v901 = vmul.f32 %v789, %v876
          %v902 = vmul.f32 %v790, %v881
          %v903 = vmul.f32 %v791, %v886
          %v904 = vld [vmem:[%s508] sm:$0xf]
          %v905 = vld [vmem:[%s508 + $0x4] sm:$0xf]
          %v906 = vld [vmem:[%s508 + $0x8] sm:$0xf]
          %v907 = vld [vmem:[%s508 + $0xc] sm:$0xf]
          %v908 = vld [vmem:[%s508 + $0x10] sm:$0xf]
          %v909 = vld [vmem:[%s508 + $0x14] sm:$0xf]
          %v910 = vld [vmem:[%s508 + $0x18] sm:$0xf]
          %v911 = vld [vmem:[%s508 + $0x1c] sm:$0xf]
          %v912 = vld [vmem:[%s508 + $0x20] sm:$0xf]
          %v913 = vld [vmem:[%s508 + $0x24] sm:$0xf]
          %v914 = vld [vmem:[%s508 + $0x28] sm:$0xf]
          %v915 = vld [vmem:[%s508 + $0x2c] sm:$0xf]
          %v916 = vld [vmem:[%s508 + $0x30] sm:$0xf]
          %v917 = vld [vmem:[%s508 + $0x34] sm:$0xf]
          %v918 = vld [vmem:[%s508 + $0x38] sm:$0xf]
          %v919 = vld [vmem:[%s508 + $0x3c] sm:$0xf]
          %v920 = vunpack.c.l.bf16 %v904
          %v921 = vunpack.c.l.bf16 %v905
          %v922 = vunpack.c.l.bf16 %v906
          %v923 = vunpack.c.l.bf16 %v907
          %v924 = vunpack.c.l.bf16 %v908
          %v925 = vunpack.c.l.bf16 %v909
          %v926 = vunpack.c.l.bf16 %v910
          %v927 = vunpack.c.l.bf16 %v911
          %v928 = vunpack.c.l.bf16 %v912
          %v929 = vunpack.c.l.bf16 %v913
          %v930 = vunpack.c.l.bf16 %v914
          %v931 = vunpack.c.l.bf16 %v915
          %v932 = vunpack.c.l.bf16 %v916
          %v933 = vunpack.c.l.bf16 %v917
          %v934 = vunpack.c.l.bf16 %v918
          %v935 = vunpack.c.l.bf16 %v919
          %v936 = vpack.c.bf16 %v889, %v888
          %v937 = vpack.c.bf16 %v891, %v890
          %v938 = vpack.c.bf16 %v893, %v892
          %v939 = vpack.c.bf16 %v895, %v894
          %v940 = vpack.c.bf16 %v897, %v896
          %v941 = vpack.c.bf16 %v899, %v898
          %v942 = vpack.c.bf16 %v901, %v900
          %v943 = vpack.c.bf16 %v903, %v902
          %v944 = vld [vmem:[#allocation13] sm:$0xf]
          %v945 = vld [vmem:[#allocation13 + $0x4] sm:$0xf]
          %v946 = vld [vmem:[#allocation13 + $0x8] sm:$0xf]
          %v947 = vld [vmem:[#allocation13 + $0xc] sm:$0xf]
          %v948 = vld [vmem:[#allocation13 + $0x10] sm:$0xf]
          %v949 = vld [vmem:[#allocation13 + $0x14] sm:$0xf]
          %v950 = vld [vmem:[#allocation13 + $0x18] sm:$0xf]
          %v951 = vld [vmem:[#allocation13 + $0x1c] sm:$0xf]
          %v952 = vld [vmem:[#allocation13 + $0x20] sm:$0xf]
          %v953 = vld [vmem:[#allocation13 + $0x24] sm:$0xf]
          %v954 = vld [vmem:[#allocation13 + $0x28] sm:$0xf]
          %v955 = vld [vmem:[#allocation13 + $0x2c] sm:$0xf]
          %v956 = vld [vmem:[#allocation13 + $0x30] sm:$0xf]
          %v957 = vld [vmem:[#allocation13 + $0x34] sm:$0xf]
          %v958 = vld [vmem:[#allocation13 + $0x38] sm:$0xf]
          %v959 = vld [vmem:[#allocation13 + $0x3c] sm:$0xf]
          %v960 = vld [vmem:[%s11] sm:$0x1]
          %v962 = vlaneseq
          %v963 = vshrl.u32 %v962, 7
          %v964 = vsub.s32 0, %v963
          %v965 = vrot.slane %v960, %v964
          %v983 = vunpack.c.l.b16 %v944
          %v984 = vunpack.c.l.b16 %v945
          %v985 = vunpack.c.l.b16 %v946
          %v986 = vunpack.c.l.b16 %v947
          %v987 = vunpack.c.l.b16 %v948
          %v988 = vunpack.c.l.b16 %v949
          %v989 = vunpack.c.l.b16 %v950
          %v990 = vunpack.c.l.b16 %v951
          %v991 = vunpack.c.l.b16 %v952
          %v992 = vunpack.c.l.b16 %v953
          %v993 = vunpack.c.l.b16 %v954
          %v994 = vunpack.c.l.b16 %v955
          %v995 = vunpack.c.l.b16 %v956
          %v996 = vunpack.c.l.b16 %v957
          %v997 = vunpack.c.l.b16 %v958
          %v998 = vunpack.c.l.b16 %v959
          %v999 = vpack.c.b16 %v984, %v983
          %v1000 = vpack.c.b16 %v986, %v985
          %v1001 = vpack.c.b16 %v988, %v987
          %v1002 = vpack.c.b16 %v990, %v989
          %v1003 = vpack.c.b16 %v992, %v991
          %v1004 = vpack.c.b16 %v994, %v993
          %v1005 = vpack.c.b16 %v996, %v995
          %v1006 = vpack.c.b16 %v998, %v997
          %1015 = vmatprep.subr.bf16.mxu0 0
          %1016 = vmatpush1.bf16.msra.mxu0 %v999
          %1017 = vmatprep.subr.bf16.mxu0 0
          %1018 = vmatpush1.bf16.msra.mxu0 %v1000
          %1019 = vmatprep.subr.bf16.mxu0 0
          %1020 = vmatpush1.bf16.msra.mxu0 %v1001
          %1021 = vmatprep.subr.bf16.mxu0 0
          %1022 = vmatpush1.bf16.msra.mxu0 %v1002
          %1023 = vmatprep.subr.bf16.mxu0 0
          %1024 = vmatpush1.bf16.msra.mxu0 %v1003
          %1025 = vmatprep.subr.bf16.mxu0 0
          %1026 = vmatpush1.bf16.msra.mxu0 %v1004
          %1027 = vmatprep.subr.bf16.mxu0 0
          %1028 = vmatpush1.bf16.msra.mxu0 %v1005
          %1029 = vmatprep.subr.bf16.mxu0 0
          %1030 = vmatpush1.bf16.msra.mxu0 %v1006
          %1031 = vmatprep.subr.bf16.mxu0 0
          %1032 = vmatpush1.bf16.msra.mxu0 0
          %1033 = vmatprep.subr.bf16.mxu0 0
          %1034 = vmatpush1.bf16.msra.mxu0 0
          %1035 = vmatprep.subr.bf16.mxu0 0
          %1036 = vmatpush1.bf16.msra.mxu0 0
          %1037 = vmatprep.subr.bf16.mxu0 0
          %1038 = vmatpush1.bf16.msra.mxu0 0
          %1039 = vmatprep.subr.bf16.mxu0 0
          %1040 = vmatpush1.bf16.msra.mxu0 0
          %1041 = vmatprep.subr.bf16.mxu0 0
          %1042 = vmatpush1.bf16.msra.mxu0 0
          %1043 = vmatprep.subr.bf16.mxu0 0
          %1044 = vmatpush1.bf16.msra.mxu0 0
          %1045 = vmatprep.subr.bf16.mxu0 0
          %1046 = vmatpush1.bf16.msra.mxu0 0
          %1047 = vmatprep.mubr.bf16.mxu0 0
          %1048 = vmatmul.mubr.bf16.gmra.mrb[0].mxu0 %v936
          %v1049 = vpop.f32.mrb[0].mxu0
          %v1050 = vadd.f32 %v965, %v1049
          %v1051 = vpop.f32.mrb[0].mxu0
          %v1052 = vpop.f32.mrb[0].mxu0
          %v1053 = vadd.f32 %v965, %v1052
          %v1054 = vpop.f32.mrb[0].mxu0
          %1055 = vmatprep.mubr.bf16.mxu0 0
          %1056 = vmatmul.mubr.bf16.gmra.mrb[0].mxu0 %v937
          %v1057 = vpop.f32.mrb[0].mxu0
          %v1058 = vadd.f32 %v965, %v1057
          %v1059 = vpop.f32.mrb[0].mxu0
          %v1060 = vpop.f32.mrb[0].mxu0
          %v1061 = vadd.f32 %v965, %v1060
          %v1062 = vpop.f32.mrb[0].mxu0
          %1063 = vmatprep.mubr.bf16.mxu0 0
          %1064 = vmatmul.mubr.bf16.gmra.mrb[0].mxu0 %v938
          %v1065 = vpop.f32.mrb[0].mxu0
          %v1066 = vadd.f32 %v965, %v1065
          %v1067 = vpop.f32.mrb[0].mxu0
          %v1068 = vpop.f32.mrb[0].mxu0
          %v1069 = vadd.f32 %v965, %v1068
          %v1070 = vpop.f32.mrb[0].mxu0
          %1071 = vmatprep.mubr.bf16.mxu0 0
          %1072 = vmatmul.mubr.bf16.gmra.mrb[0].mxu0 %v939
          %v1073 = vpop.f32.mrb[0].mxu0
          %v1074 = vadd.f32 %v965, %v1073
          %v1075 = vpop.f32.mrb[0].mxu0
          %v1076 = vpop.f32.mrb[0].mxu0
          %v1077 = vadd.f32 %v965, %v1076
          %v1078 = vpop.f32.mrb[0].mxu0
          %1079 = vmatprep.mubr.bf16.mxu0 0
          %1080 = vmatmul.mubr.bf16.gmra.mrb[0].mxu0 %v940
          %v1081 = vpop.f32.mrb[0].mxu0
          %v1082 = vadd.f32 %v965, %v1081
          %v1083 = vpop.f32.mrb[0].mxu0
          %v1084 = vpop.f32.mrb[0].mxu0
          %v1085 = vadd.f32 %v965, %v1084
          %v1086 = vpop.f32.mrb[0].mxu0
          %1087 = vmatprep.mubr.bf16.mxu0 0
          %1088 = vmatmul.mubr.bf16.gmra.mrb[0].mxu0 %v941
          %v1089 = vpop.f32.mrb[0].mxu0
          %v1090 = vadd.f32 %v965, %v1089
          %v1091 = vpop.f32.mrb[0].mxu0
          %v1092 = vpop.f32.mrb[0].mxu0
          %v1093 = vadd.f32 %v965, %v1092
          %v1094 = vpop.f32.mrb[0].mxu0
          %1095 = vmatprep.mubr.bf16.mxu0 0
          %1096 = vmatmul.mubr.bf16.gmra.mrb[0].mxu0 %v942
          %v1097 = vpop.f32.mrb[0].mxu0
          %v1098 = vadd.f32 %v965, %v1097
          %v1099 = vpop.f32.mrb[0].mxu0
          %v1100 = vpop.f32.mrb[0].mxu0
          %v1101 = vadd.f32 %v965, %v1100
          %v1102 = vpop.f32.mrb[0].mxu0
          %1103 = vmatprep.mubr.bf16.mxu0 0
          %1104 = vmatmul.mubr.bf16.gmra.mrb[0].mxu0 %v943
          %v1105 = vpop.f32.mrb[0].mxu0
          %v1106 = vadd.f32 %v965, %v1105
          %v1107 = vpop.f32.mrb[0].mxu0
          %v1108 = vpop.f32.mrb[0].mxu0
          %v1109 = vadd.f32 %v965, %v1108
          %v1110 = vpop.f32.mrb[0].mxu0
          %1111 = vdwg.mxu0
          %vm1112 = vcmp.ge.f32.partialorder %v1050, 0.0
          %vm1113 = vcmp.ge.f32.partialorder %v1053, 0.0
          %vm1114 = vcmp.ge.f32.partialorder %v1058, 0.0
          %vm1115 = vcmp.ge.f32.partialorder %v1061, 0.0
          %vm1116 = vcmp.ge.f32.partialorder %v1066, 0.0
          %vm1117 = vcmp.ge.f32.partialorder %v1069, 0.0
          %vm1118 = vcmp.ge.f32.partialorder %v1074, 0.0
          %vm1119 = vcmp.ge.f32.partialorder %v1077, 0.0
          %vm1120 = vcmp.ge.f32.partialorder %v1082, 0.0
          %vm1121 = vcmp.ge.f32.partialorder %v1085, 0.0
          %vm1122 = vcmp.ge.f32.partialorder %v1090, 0.0
          %vm1123 = vcmp.ge.f32.partialorder %v1093, 0.0
          %vm1124 = vcmp.ge.f32.partialorder %v1098, 0.0
          %vm1125 = vcmp.ge.f32.partialorder %v1101, 0.0
          %vm1126 = vcmp.ge.f32.partialorder %v1106, 0.0
          %vm1127 = vcmp.ge.f32.partialorder %v1109, 0.0
          %v1128 = vmul.f32 %v1050, 0.01
          %v1129 = vmul.f32 %v1053, 0.01
          %v1130 = vmul.f32 %v1058, 0.01
          %v1131 = vmul.f32 %v1061, 0.01
          %v1132 = vmul.f32 %v1066, 0.01
          %v1133 = vmul.f32 %v1069, 0.01
          %v1134 = vmul.f32 %v1074, 0.01
          %v1135 = vmul.f32 %v1077, 0.01
          %v1136 = vmul.f32 %v1082, 0.01
          %v1137 = vmul.f32 %v1085, 0.01
          %v1138 = vmul.f32 %v1090, 0.01
          %v1139 = vmul.f32 %v1093, 0.01
          %v1140 = vmul.f32 %v1098, 0.01
          %v1141 = vmul.f32 %v1101, 0.01
          %v1142 = vmul.f32 %v1106, 0.01
          %v1143 = vmul.f32 %v1109, 0.01
          %v1144 = vsel %vm1112, %v1050, %v1128
          %v1145 = vsel %vm1113, %v1053, %v1129
          %v1146 = vsel %vm1114, %v1058, %v1130
          %v1147 = vsel %vm1115, %v1061, %v1131
          %v1148 = vsel %vm1116, %v1066, %v1132
          %v1149 = vsel %vm1117, %v1069, %v1133
          %v1150 = vsel %vm1118, %v1074, %v1134
          %v1151 = vsel %vm1119, %v1077, %v1135
          %v1152 = vsel %vm1120, %v1082, %v1136
          %v1153 = vsel %vm1121, %v1085, %v1137
          %v1154 = vsel %vm1122, %v1090, %v1138
          %v1155 = vsel %vm1123, %v1093, %v1139
          %v1156 = vsel %vm1124, %v1098, %v1140
          %v1157 = vsel %vm1125, %v1101, %v1141
          %v1158 = vsel %vm1126, %v1106, %v1142
          %v1159 = vsel %vm1127, %v1109, %v1143
          %v1160 = vmul.f32 %v920, %v888
          %v1161 = vmul.f32 %v921, %v889
          %v1162 = vmul.f32 %v922, %v890
          %v1163 = vmul.f32 %v923, %v891
          %v1164 = vmul.f32 %v924, %v892
          %v1165 = vmul.f32 %v925, %v893
          %v1166 = vmul.f32 %v926, %v894
          %v1167 = vmul.f32 %v927, %v895
          %v1168 = vmul.f32 %v928, %v896
          %v1169 = vmul.f32 %v929, %v897
          %v1170 = vmul.f32 %v930, %v898
          %v1171 = vmul.f32 %v931, %v899
          %v1172 = vmul.f32 %v932, %v900
          %v1173 = vmul.f32 %v933, %v901
          %v1174 = vmul.f32 %v934, %v902
          %v1175 = vmul.f32 %v935, %v903
          %v1176 = vpack.c.bf16 %v1161, %v1160
          %v1177 = vpack.c.bf16 %v1163, %v1162
          %v1178 = vpack.c.bf16 %v1165, %v1164
          %v1179 = vpack.c.bf16 %v1167, %v1166
          %v1180 = vpack.c.bf16 %v1169, %v1168
          %v1181 = vpack.c.bf16 %v1171, %v1170
          %v1182 = vpack.c.bf16 %v1173, %v1172
          %v1183 = vpack.c.bf16 %v1175, %v1174
          %v1184 = vld [vmem:[#allocation15] sm:$0xf]
          %v1185 = vld [vmem:[#allocation15 + $0x4] sm:$0xf]
          %v1186 = vld [vmem:[#allocation15 + $0x8] sm:$0xf]
          %v1187 = vld [vmem:[#allocation15 + $0xc] sm:$0xf]
          %v1188 = vld [vmem:[#allocation15 + $0x10] sm:$0xf]
          %v1189 = vld [vmem:[#allocation15 + $0x14] sm:$0xf]
          %v1190 = vld [vmem:[#allocation15 + $0x18] sm:$0xf]
          %v1191 = vld [vmem:[#allocation15 + $0x1c] sm:$0xf]
          %v1192 = vld [vmem:[#allocation15 + $0x20] sm:$0xf]
          %v1193 = vld [vmem:[#allocation15 + $0x24] sm:$0xf]
          %v1194 = vld [vmem:[#allocation15 + $0x28] sm:$0xf]
          %v1195 = vld [vmem:[#allocation15 + $0x2c] sm:$0xf]
          %v1196 = vld [vmem:[#allocation15 + $0x30] sm:$0xf]
          %v1197 = vld [vmem:[#allocation15 + $0x34] sm:$0xf]
          %v1198 = vld [vmem:[#allocation15 + $0x38] sm:$0xf]
          %v1199 = vld [vmem:[#allocation15 + $0x3c] sm:$0xf]
          %v1200 = vld [vmem:[%s13] sm:$0x1]
          %v1202 = vlaneseq
          %v1203 = vshrl.u32 %v1202, 7
          %v1204 = vsub.s32 0, %v1203
          %v1205 = vrot.slane %v1200, %v1204
          %v1223 = vunpack.c.l.b16 %v1184
          %v1224 = vunpack.c.l.b16 %v1185
          %v1225 = vunpack.c.l.b16 %v1186
          %v1226 = vunpack.c.l.b16 %v1187
          %v1227 = vunpack.c.l.b16 %v1188
          %v1228 = vunpack.c.l.b16 %v1189
          %v1229 = vunpack.c.l.b16 %v1190
          %v1230 = vunpack.c.l.b16 %v1191
          %v1231 = vunpack.c.l.b16 %v1192
          %v1232 = vunpack.c.l.b16 %v1193
          %v1233 = vunpack.c.l.b16 %v1194
          %v1234 = vunpack.c.l.b16 %v1195
          %v1235 = vunpack.c.l.b16 %v1196
          %v1236 = vunpack.c.l.b16 %v1197
          %v1237 = vunpack.c.l.b16 %v1198
          %v1238 = vunpack.c.l.b16 %v1199
          %v1239 = vpack.c.b16 %v1224, %v1223
          %v1240 = vpack.c.b16 %v1226, %v1225
          %v1241 = vpack.c.b16 %v1228, %v1227
          %v1242 = vpack.c.b16 %v1230, %v1229
          %v1243 = vpack.c.b16 %v1232, %v1231
          %v1244 = vpack.c.b16 %v1234, %v1233
          %v1245 = vpack.c.b16 %v1236, %v1235
          %v1246 = vpack.c.b16 %v1238, %v1237
          %1255 = vmatprep.subr.bf16.mxu0 0
          %1256 = vmatpush1.bf16.msra.mxu0 %v1239
          %1257 = vmatprep.subr.bf16.mxu0 0
          %1258 = vmatpush1.bf16.msra.mxu0 %v1240
          %1259 = vmatprep.subr.bf16.mxu0 0
          %1260 = vmatpush1.bf16.msra.mxu0 %v1241
          %1261 = vmatprep.subr.bf16.mxu0 0
          %1262 = vmatpush1.bf16.msra.mxu0 %v1242
          %1263 = vmatprep.subr.bf16.mxu0 0
          %1264 = vmatpush1.bf16.msra.mxu0 %v1243
          %1265 = vmatprep.subr.bf16.mxu0 0
          %1266 = vmatpush1.bf16.msra.mxu0 %v1244
          %1267 = vmatprep.subr.bf16.mxu0 0
          %1268 = vmatpush1.bf16.msra.mxu0 %v1245
          %1269 = vmatprep.subr.bf16.mxu0 0
          %1270 = vmatpush1.bf16.msra.mxu0 %v1246
          %1271 = vmatprep.subr.bf16.mxu0 0
          %1272 = vmatpush1.bf16.msra.mxu0 0
          %1273 = vmatprep.subr.bf16.mxu0 0
          %1274 = vmatpush1.bf16.msra.mxu0 0
          %1275 = vmatprep.subr.bf16.mxu0 0
          %1276 = vmatpush1.bf16.msra.mxu0 0
          %1277 = vmatprep.subr.bf16.mxu0 0
          %1278 = vmatpush1.bf16.msra.mxu0 0
          %1279 = vmatprep.subr.bf16.mxu0 0
          %1280 = vmatpush1.bf16.msra.mxu0 0
          %1281 = vmatprep.subr.bf16.mxu0 0
          %1282 = vmatpush1.bf16.msra.mxu0 0
          %1283 = vmatprep.subr.bf16.mxu0 0
          %1284 = vmatpush1.bf16.msra.mxu0 0
          %1285 = vmatprep.subr.bf16.mxu0 0
          %1286 = vmatpush1.bf16.msra.mxu0 0
          %1287 = vmatprep.mubr.bf16.mxu0 0
          %1288 = vmatmul.mubr.bf16.gmra.mrb[0].mxu0 %v1176
          %v1289 = vpop.f32.mrb[0].mxu0
          %v1290 = vadd.f32 %v1205, %v1289
          %v1291 = vpop.f32.mrb[0].mxu0
          %v1292 = vpop.f32.mrb[0].mxu0
          %v1293 = vadd.f32 %v1205, %v1292
          %v1294 = vpop.f32.mrb[0].mxu0
          %1295 = vmatprep.mubr.bf16.mxu0 0
          %1296 = vmatmul.mubr.bf16.gmra.mrb[0].mxu0 %v1177
          %v1297 = vpop.f32.mrb[0].mxu0
          %v1298 = vadd.f32 %v1205, %v1297
          %v1299 = vpop.f32.mrb[0].mxu0
          %v1300 = vpop.f32.mrb[0].mxu0
          %v1301 = vadd.f32 %v1205, %v1300
          %v1302 = vpop.f32.mrb[0].mxu0
          %1303 = vmatprep.mubr.bf16.mxu0 0
          %1304 = vmatmul.mubr.bf16.gmra.mrb[0].mxu0 %v1178
          %v1305 = vpop.f32.mrb[0].mxu0
          %v1306 = vadd.f32 %v1205, %v1305
          %v1307 = vpop.f32.mrb[0].mxu0
          %v1308 = vpop.f32.mrb[0].mxu0
          %v1309 = vadd.f32 %v1205, %v1308
          %v1310 = vpop.f32.mrb[0].mxu0
          %1311 = vmatprep.mubr.bf16.mxu0 0
          %1312 = vmatmul.mubr.bf16.gmra.mrb[0].mxu0 %v1179
          %v1313 = vpop.f32.mrb[0].mxu0
          %v1314 = vadd.f32 %v1205, %v1313
          %v1315 = vpop.f32.mrb[0].mxu0
          %v1316 = vpop.f32.mrb[0].mxu0
          %v1317 = vadd.f32 %v1205, %v1316
          %v1318 = vpop.f32.mrb[0].mxu0
          %1319 = vmatprep.mubr.bf16.mxu0 0
          %1320 = vmatmul.mubr.bf16.gmra.mrb[0].mxu0 %v1180
          %v1321 = vpop.f32.mrb[0].mxu0
          %v1322 = vadd.f32 %v1205, %v1321
          %v1323 = vpop.f32.mrb[0].mxu0
          %v1324 = vpop.f32.mrb[0].mxu0
          %v1325 = vadd.f32 %v1205, %v1324
          %v1326 = vpop.f32.mrb[0].mxu0
          %1327 = vmatprep.mubr.bf16.mxu0 0
          %1328 = vmatmul.mubr.bf16.gmra.mrb[0].mxu0 %v1181
          %v1329 = vpop.f32.mrb[0].mxu0
          %v1330 = vadd.f32 %v1205, %v1329
          %v1331 = vpop.f32.mrb[0].mxu0
          %v1332 = vpop.f32.mrb[0].mxu0
          %v1333 = vadd.f32 %v1205, %v1332
          %v1334 = vpop.f32.mrb[0].mxu0
          %1335 = vmatprep.mubr.bf16.mxu0 0
          %1336 = vmatmul.mubr.bf16.gmra.mrb[0].mxu0 %v1182
          %v1337 = vpop.f32.mrb[0].mxu0
          %v1338 = vadd.f32 %v1205, %v1337
          %v1339 = vpop.f32.mrb[0].mxu0
          %v1340 = vpop.f32.mrb[0].mxu0
          %v1341 = vadd.f32 %v1205, %v1340
          %v1342 = vpop.f32.mrb[0].mxu0
          %1343 = vmatprep.mubr.bf16.mxu0 0
          %1344 = vmatmul.mubr.bf16.gmra.mrb[0].mxu0 %v1183
          %v1345 = vpop.f32.mrb[0].mxu0
          %v1346 = vadd.f32 %v1205, %v1345
          %v1347 = vpop.f32.mrb[0].mxu0
          %v1348 = vpop.f32.mrb[0].mxu0
          %v1349 = vadd.f32 %v1205, %v1348
          %v1350 = vpop.f32.mrb[0].mxu0
          %1351 = vdwg.mxu0
          %vm1352 = vcmp.ge.f32.partialorder %v1290, 0.0
          %vm1353 = vcmp.ge.f32.partialorder %v1293, 0.0
          %vm1354 = vcmp.ge.f32.partialorder %v1298, 0.0
          %vm1355 = vcmp.ge.f32.partialorder %v1301, 0.0
          %vm1356 = vcmp.ge.f32.partialorder %v1306, 0.0
          %vm1357 = vcmp.ge.f32.partialorder %v1309, 0.0
          %vm1358 = vcmp.ge.f32.partialorder %v1314, 0.0
          %vm1359 = vcmp.ge.f32.partialorder %v1317, 0.0
          %vm1360 = vcmp.ge.f32.partialorder %v1322, 0.0
          %vm1361 = vcmp.ge.f32.partialorder %v1325, 0.0
          %vm1362 = vcmp.ge.f32.partialorder %v1330, 0.0
          %vm1363 = vcmp.ge.f32.partialorder %v1333, 0.0
          %vm1364 = vcmp.ge.f32.partialorder %v1338, 0.0
          %vm1365 = vcmp.ge.f32.partialorder %v1341, 0.0
          %vm1366 = vcmp.ge.f32.partialorder %v1346, 0.0
          %vm1367 = vcmp.ge.f32.partialorder %v1349, 0.0
          %v1368 = vmul.f32 %v1290, 0.01
          %v1369 = vmul.f32 %v1293, 0.01
          %v1370 = vmul.f32 %v1298, 0.01
          %v1371 = vmul.f32 %v1301, 0.01
          %v1372 = vmul.f32 %v1306, 0.01
          %v1373 = vmul.f32 %v1309, 0.01
          %v1374 = vmul.f32 %v1314, 0.01
          %v1375 = vmul.f32 %v1317, 0.01
          %v1376 = vmul.f32 %v1322, 0.01
          %v1377 = vmul.f32 %v1325, 0.01
          %v1378 = vmul.f32 %v1330, 0.01
          %v1379 = vmul.f32 %v1333, 0.01
          %v1380 = vmul.f32 %v1338, 0.01
          %v1381 = vmul.f32 %v1341, 0.01
          %v1382 = vmul.f32 %v1346, 0.01
          %v1383 = vmul.f32 %v1349, 0.01
          %v1384 = vsel %vm1352, %v1290, %v1368
          %v1385 = vsel %vm1353, %v1293, %v1369
          %v1386 = vsel %vm1354, %v1298, %v1370
          %v1387 = vsel %vm1355, %v1301, %v1371
          %v1388 = vsel %vm1356, %v1306, %v1372
          %v1389 = vsel %vm1357, %v1309, %v1373
          %v1390 = vsel %vm1358, %v1314, %v1374
          %v1391 = vsel %vm1359, %v1317, %v1375
          %v1392 = vsel %vm1360, %v1322, %v1376
          %v1393 = vsel %vm1361, %v1325, %v1377
          %v1394 = vsel %vm1362, %v1330, %v1378
          %v1395 = vsel %vm1363, %v1333, %v1379
          %v1396 = vsel %vm1364, %v1338, %v1380
          %v1397 = vsel %vm1365, %v1341, %v1381
          %v1398 = vsel %vm1366, %v1346, %v1382
          %v1399 = vsel %vm1367, %v1349, %v1383
          %v1400 = vadd.f32 %v1144, %v1384
          %v1401 = vadd.f32 %v1145, %v1385
          %v1402 = vadd.f32 %v1146, %v1386
          %v1403 = vadd.f32 %v1147, %v1387
          %v1404 = vadd.f32 %v1148, %v1388
          %v1405 = vadd.f32 %v1149, %v1389
          %v1406 = vadd.f32 %v1150, %v1390
          %v1407 = vadd.f32 %v1151, %v1391
          %v1408 = vadd.f32 %v1152, %v1392
          %v1409 = vadd.f32 %v1153, %v1393
          %v1410 = vadd.f32 %v1154, %v1394
          %v1411 = vadd.f32 %v1155, %v1395
          %v1412 = vadd.f32 %v1156, %v1396
          %v1413 = vadd.f32 %v1157, %v1397
          %v1414 = vadd.f32 %v1158, %v1398
          %v1415 = vadd.f32 %v1159, %v1399
          %v1416 = vmul.f32 %v1400, %v1400
          %v1417 = vmul.f32 %v1401, %v1401
          %v1418 = vmul.f32 %v1402, %v1402
          %v1419 = vmul.f32 %v1403, %v1403
          %v1420 = vmul.f32 %v1404, %v1404
          %v1421 = vmul.f32 %v1405, %v1405
          %v1422 = vmul.f32 %v1406, %v1406
          %v1423 = vmul.f32 %v1407, %v1407
          %v1424 = vmul.f32 %v1408, %v1408
          %v1425 = vmul.f32 %v1409, %v1409
          %v1426 = vmul.f32 %v1410, %v1410
          %v1427 = vmul.f32 %v1411, %v1411
          %v1428 = vmul.f32 %v1412, %v1412
          %v1429 = vmul.f32 %v1413, %v1413
          %v1430 = vmul.f32 %v1414, %v1414
          %v1431 = vmul.f32 %v1415, %v1415
          %1432 = vadd.xlane.f32.xlu0 %v1416
          %v1433 = vpop.xlane.xlu0 %1432
          %1434 = vadd.xlane.f32.xlu0 %v1417
          %v1435 = vpop.xlane.xlu0 %1434
          %1436 = vadd.xlane.f32.xlu0 %v1418
          %v1437 = vpop.xlane.xlu0 %1436
          %1438 = vadd.xlane.f32.xlu0 %v1419
          %v1439 = vpop.xlane.xlu0 %1438
          %1440 = vadd.xlane.f32.xlu0 %v1420
          %v1441 = vpop.xlane.xlu0 %1440
          %1442 = vadd.xlane.f32.xlu0 %v1421
          %v1443 = vpop.xlane.xlu0 %1442
          %1444 = vadd.xlane.f32.xlu0 %v1422
          %v1445 = vpop.xlane.xlu0 %1444
          %1446 = vadd.xlane.f32.xlu0 %v1423
          %v1447 = vpop.xlane.xlu0 %1446
          %1448 = vadd.xlane.f32.xlu0 %v1424
          %v1449 = vpop.xlane.xlu0 %1448
          %1450 = vadd.xlane.f32.xlu0 %v1425
          %v1451 = vpop.xlane.xlu0 %1450
          %1452 = vadd.xlane.f32.xlu0 %v1426
          %v1453 = vpop.xlane.xlu0 %1452
          %1454 = vadd.xlane.f32.xlu0 %v1427
          %v1455 = vpop.xlane.xlu0 %1454
          %1456 = vadd.xlane.f32.xlu0 %v1428
          %v1457 = vpop.xlane.xlu0 %1456
          %1458 = vadd.xlane.f32.xlu0 %v1429
          %v1459 = vpop.xlane.xlu0 %1458
          %1460 = vadd.xlane.f32.xlu0 %v1430
          %v1461 = vpop.xlane.xlu0 %1460
          %1462 = vadd.xlane.f32.xlu0 %v1431
          %v1463 = vpop.xlane.xlu0 %1462
          %v1464 = vmax.f32 %v1433, 1e-24
          %v1465 = vmax.f32 %v1435, 1e-24
          %v1466 = vmax.f32 %v1437, 1e-24
          %v1467 = vmax.f32 %v1439, 1e-24
          %v1468 = vmax.f32 %v1441, 1e-24
          %v1469 = vmax.f32 %v1443, 1e-24
          %v1470 = vmax.f32 %v1445, 1e-24
          %v1471 = vmax.f32 %v1447, 1e-24
          %v1472 = vmax.f32 %v1449, 1e-24
          %v1473 = vmax.f32 %v1451, 1e-24
          %v1474 = vmax.f32 %v1453, 1e-24
          %v1475 = vmax.f32 %v1455, 1e-24
          %v1476 = vmax.f32 %v1457, 1e-24
          %v1477 = vmax.f32 %v1459, 1e-24
          %v1478 = vmax.f32 %v1461, 1e-24
          %v1479 = vmax.f32 %v1463, 1e-24
          %v1480 = vrsqrt.pop %v1464
          %v1481 = vrsqrt.pop %v1465
          %v1482 = vrsqrt.pop %v1466
          %v1483 = vrsqrt.pop %v1467
          %v1484 = vrsqrt.pop %v1468
          %v1485 = vrsqrt.pop %v1469
          %v1486 = vrsqrt.pop %v1470
          %v1487 = vrsqrt.pop %v1471
          %v1488 = vrsqrt.pop %v1472
          %v1489 = vrsqrt.pop %v1473
          %v1490 = vrsqrt.pop %v1474
          %v1491 = vrsqrt.pop %v1475
          %v1492 = vrsqrt.pop %v1476
          %v1493 = vrsqrt.pop %v1477
          %v1494 = vrsqrt.pop %v1478
          %v1495 = vrsqrt.pop %v1479
          %v1496 = vpack.c.bf16 %v1401, %v1400
          %v1497 = vpack.c.bf16 %v1403, %v1402
          %v1498 = vpack.c.bf16 %v1405, %v1404
          %v1499 = vpack.c.bf16 %v1407, %v1406
          %v1500 = vpack.c.bf16 %v1409, %v1408
          %v1501 = vpack.c.bf16 %v1411, %v1410
          %v1502 = vpack.c.bf16 %v1413, %v1412
          %v1503 = vpack.c.bf16 %v1415, %v1414
          %v1512 = vunpack.c.l.b16 %v1496
          %v1513 = vunpack.c.h.b16 %v1496
          %v1514 = vunpack.c.l.b16 %v1497
          %v1515 = vunpack.c.h.b16 %v1497
          %v1516 = vunpack.c.l.b16 %v1498
          %v1517 = vunpack.c.h.b16 %v1498
          %v1518 = vunpack.c.l.b16 %v1499
          %v1519 = vunpack.c.h.b16 %v1499
          %v1520 = vunpack.c.l.b16 %v1500
          %v1521 = vunpack.c.h.b16 %v1500
          %v1522 = vunpack.c.l.b16 %v1501
          %v1523 = vunpack.c.h.b16 %v1501
          %v1524 = vunpack.c.l.b16 %v1502
          %v1525 = vunpack.c.h.b16 %v1502
          %v1526 = vunpack.c.l.b16 %v1503
          %v1527 = vunpack.c.h.b16 %v1503
          %v1528 = vpack.c.b16 %v1512, %v1512
          %v1529 = vpack.c.b16 %v1513, %v1513
          %v1530 = vpack.c.b16 %v1514, %v1514
          %v1531 = vpack.c.b16 %v1515, %v1515
          %v1532 = vpack.c.b16 %v1516, %v1516
          %v1533 = vpack.c.b16 %v1517, %v1517
          %v1534 = vpack.c.b16 %v1518, %v1518
          %v1535 = vpack.c.b16 %v1519, %v1519
          %v1536 = vpack.c.b16 %v1520, %v1520
          %v1537 = vpack.c.b16 %v1521, %v1521
          %v1538 = vpack.c.b16 %v1522, %v1522
          %v1539 = vpack.c.b16 %v1523, %v1523
          %v1540 = vpack.c.b16 %v1524, %v1524
          %v1541 = vpack.c.b16 %v1525, %v1525
          %v1542 = vpack.c.b16 %v1526, %v1526
          %v1543 = vpack.c.b16 %v1527, %v1527
          %1560 = vst [vmem:[%s485] sm:$0xf] %v1528
          %1561 = vst [vmem:[%s485 + $0x4] sm:$0xf] %v1529
          %1562 = vst [vmem:[%s485 + $0x8] sm:$0xf] %v1530
          %1563 = vst [vmem:[%s485 + $0xc] sm:$0xf] %v1531
          %1564 = vst [vmem:[%s485 + $0x10] sm:$0xf] %v1532
          %1565 = vst [vmem:[%s485 + $0x14] sm:$0xf] %v1533
          %1566 = vst [vmem:[%s485 + $0x18] sm:$0xf] %v1534
          %1567 = vst [vmem:[%s485 + $0x1c] sm:$0xf] %v1535
          %1568 = vst [vmem:[%s485 + $0x20] sm:$0xf] %v1536
          %1569 = vst [vmem:[%s485 + $0x24] sm:$0xf] %v1537
          %1570 = vst [vmem:[%s485 + $0x28] sm:$0xf] %v1538
          %1571 = vst [vmem:[%s485 + $0x2c] sm:$0xf] %v1539
          %1572 = vst [vmem:[%s485 + $0x30] sm:$0xf] %v1540
          %1573 = vst [vmem:[%s485 + $0x34] sm:$0xf] %v1541
          %1574 = vst [vmem:[%s485 + $0x38] sm:$0xf] %v1542
          %1575 = vst [vmem:[%s485 + $0x3c] sm:$0xf] %v1543
          %v1576 = vmul.f32 %v1400, %v1480
          %v1577 = vmul.f32 %v1401, %v1481
          %v1578 = vmul.f32 %v1402, %v1482
          %v1579 = vmul.f32 %v1403, %v1483
          %v1580 = vmul.f32 %v1404, %v1484
          %v1581 = vmul.f32 %v1405, %v1485
          %v1582 = vmul.f32 %v1406, %v1486
          %v1583 = vmul.f32 %v1407, %v1487
          %v1584 = vmul.f32 %v1408, %v1488
          %v1585 = vmul.f32 %v1409, %v1489
          %v1586 = vmul.f32 %v1410, %v1490
          %v1587 = vmul.f32 %v1411, %v1491
          %v1588 = vmul.f32 %v1412, %v1492
          %v1589 = vmul.f32 %v1413, %v1493
          %v1590 = vmul.f32 %v1414, %v1494
          %v1591 = vmul.f32 %v1415, %v1495
          %1592 = vst [vmem:[%s492] sm:$0xff] %v1576
          %1593 = vst [vmem:[%s492 + $0x8] sm:$0xff] %v1577
          %1594 = vst [vmem:[%s492 + $0x10] sm:$0xff] %v1578
          %1595 = vst [vmem:[%s492 + $0x18] sm:$0xff] %v1579
          %1596 = vst [vmem:[%s492 + $0x20] sm:$0xff] %v1580
          %1597 = vst [vmem:[%s492 + $0x28] sm:$0xff] %v1581
          %1598 = vst [vmem:[%s492 + $0x30] sm:$0xff] %v1582
          %1599 = vst [vmem:[%s492 + $0x38] sm:$0xff] %v1583
          %1600 = vst [vmem:[%s492 + $0x40] sm:$0xff] %v1584
          %1601 = vst [vmem:[%s492 + $0x48] sm:$0xff] %v1585
          %1602 = vst [vmem:[%s492 + $0x50] sm:$0xff] %v1586
          %1603 = vst [vmem:[%s492 + $0x58] sm:$0xff] %v1587
          %1604 = vst [vmem:[%s492 + $0x60] sm:$0xff] %v1588
          %1605 = vst [vmem:[%s492 + $0x68] sm:$0xff] %v1589
          %1606 = vst [vmem:[%s492 + $0x70] sm:$0xff] %v1590
          %1607 = vst [vmem:[%s492 + $0x78] sm:$0xff] %v1591
        $region76: #{tpu_custom_call.1} parent=51 // pred_fallthru
          _
        %s1608 = sand.u32 %s269, 1
        %s1609 = scalar_lea.sflag [#allocation12], %s1608
        %s1610 = sand.u32 %s269, 1
        %s1611 = smul.addr %s1610, 64
        %s1612 = scalar_lea.vmem [#allocation16], %s1611
        %s1613 = sand.u32 %s297, 1
        %s1614 = scalar_lea.sflag [#allocation18], %s1613
        %s1615 = sand.u32 %s297, 1
        %s1616 = smul.addr %s1615, 128
        %s1617 = scalar_lea.vmem [#allocation17], %s1616
        // Predicated region
        $region77: #{tpu_custom_call.1} parent=51 // pred_check
          %p1618 = pneg %p279
        $region78: #{tpu_custom_call.1} parent=51 // pred_check_branch
          %1620 = sbr.rel (%p1618) target = $region80
        $region79: #{tpu_custom_call.1} parent=51 // pred_region
          %s1621 = sld [smem:[#allocation4 + %s63]]
          %s1622 = smul.u32 16, %s1621
          %s1624 = ssub.s32 1024, 1024
          %1625 = vsyncadd %s1609, %s1624
          %s1626 = smul.addr %s1622, 64
          %s1627 = scalar_lea.hbm %s14, %s1626
          %s1628 = sshll.u32 %s1612, 4
          %s1629 = int_to_ptr.vmem [resolvable:$true] %s1628
          %1634 = dma.vmem_to_hbm [thread:$0]  %s1629, 1024, %s1627, %s1609, 64, 64, 4
        $region80: #{tpu_custom_call.1} parent=51 // pred_fallthru
          _
        // Predicated region
        $region81: #{tpu_custom_call.1} parent=51 // pred_check
          %p1635 = pneg %p307
        $region82: #{tpu_custom_call.1} parent=51 // pred_check_branch
          %1637 = sbr.rel (%p1635) target = $region84
        $region83: #{tpu_custom_call.1} parent=51 // pred_region
          %s1638 = sld [smem:[#allocation4 + %s63]]
          %s1639 = smul.u32 16, %s1638
          %s1641 = ssub.s32 2048, 2048
          %1642 = vsyncadd %s1614, %s1641
          %s1643 = smul.addr %s1639, 128
          %s1644 = scalar_lea.hbm %s15, %s1643
          %s1645 = sshll.u32 %s1617, 4
          %s1646 = int_to_ptr.vmem [resolvable:$true] %s1645
          %1651 = dma.vmem_to_hbm [thread:$0]  %s1646, 2048, %s1644, %s1614, 128, 128, 8
        $region84: #{tpu_custom_call.1} parent=51 // pred_fallthru
          _
      $region52: #{tpu_custom_call.1} parent=5 // pred_fallthru
        _
      %p1652 = scmp.le.s32.totalorder 2, %s58
      // Predicated region
      $region85: #{tpu_custom_call.1} parent=5 // pred_check
        %p1653 = pneg %p1652
      $region86: #{tpu_custom_call.1} parent=5 // pred_check_branch
        %1655 = sbr.rel (%p1653) target = $region88
      $region87: #{tpu_custom_call.1} parent=5 // pred_region
        %s1656 = ssub.s32 %s58, 2
        // Predicated region
        $region89: #{tpu_custom_call.1} parent=87 // pred_check
          %p1657 = pneg %p285
        $region90: #{tpu_custom_call.1} parent=87 // pred_check_branch
          %1659 = sbr.rel (%p1657) target = $region92
        $region91: #{tpu_custom_call.1} parent=87 // pred_region
          %s1660 = sand.u32 %s270, 1
          %s1661 = scalar_lea.sflag [#allocation12], %s1660
          %s1662 = sand.u32 %s270, 1
          %s1663 = smul.addr %s1662, 64
          %s1664 = scalar_lea.vmem [#allocation16], %s1663
          %1665 = dma.done %s1661, 1024
        $region92: #{tpu_custom_call.1} parent=87 // pred_fallthru
          _
        // Predicated region
        $region93: #{tpu_custom_call.1} parent=87 // pred_check
          %p1666 = pneg %p313
        $region94: #{tpu_custom_call.1} parent=87 // pred_check_branch
          %1668 = sbr.rel (%p1666) target = $region96
        $region95: #{tpu_custom_call.1} parent=87 // pred_region
          %s1669 = sand.u32 %s298, 1
          %s1670 = scalar_lea.sflag [#allocation18], %s1669
          %s1671 = sand.u32 %s298, 1
          %s1672 = smul.addr %s1671, 128
          %s1673 = scalar_lea.vmem [#allocation17], %s1672
          %1674 = dma.done %s1670, 2048
        $region96: #{tpu_custom_call.1} parent=87 // pred_fallthru
          _
      $region88: #{tpu_custom_call.1} parent=5 // pred_fallthru
        _
    $region6: #{tpu_custom_call.1} parent=1 // loop_footer
      %s62 = sadd.s32 1, %s58
    $region7: #{tpu_custom_call.1} parent=1 // loop_footer_branch
      %57 = sbr.rel target = $region3
    $region8: #{tpu_custom_call.1} parent=1 // loop_exit
      _
    %1675 = vsyncpa [#allocation11], 1
    %s1676 = scalar_lea.sflag [#allocation11], 1
    %1677 = vsyncpa %s1676, 1
    %1678 = vsyncpa [#allocation14], 1
    %1679 = vsyncpa [#allocation12], 1
    %s1680 = scalar_lea.sflag [#allocation12], 1
    %1681 = vsyncpa %s1680, 1
    %1682 = vsyncpa [#allocation18], 1
    %s1683 = scalar_lea.sflag [#allocation18], 1
    %1684 = vsyncpa %s1683, 1

</llo_original>
